<compile_context>
chip_gen: v5e
topology: v5e:2x2
jax: 0.10.0
libtpu: 0.0.40
codegen_flags: <defaults>
</compile_context>

<pallas_src>
import functools

import jax
import jax.numpy as jnp
from jax.experimental import pallas as pl
from jax.experimental.pallas import tpu as pltpu

TILE_N = 8          # batch rows per grid step (sublane multiple)
GATE_PACK = 128     # r|z|n packed into a single 128-lane tile (needs 3*H <= 128)


def _round_up(x, m):
    return ((x + m - 1) // m) * m


def _pad_to(x, shape):
    return jnp.pad(x, [(0, s - d) for d, s in zip(x.shape, shape)])


# ---------------------------------------------------------------------------
# Fused kernel: GRU recurrence + fc/ReLU/LN + lang_last + classifier
# (one grid step == one batch tile of TILE_N sequences)
# ---------------------------------------------------------------------------
def lang_kernel(x_ref, len_ref, wih_ref, whh_ref, bacc_ref, bhn_ref,
                fcw_ref, fcb_ref, lng_ref, lnb_ref, clsw_ref, clsb_ref,
                fea_ref, last_ref, scores_ref,
                ix_scratch, *, T, SLM, H, TILE_N):
    # x_ref:      [T, TILE_N, E]   time-major word embeddings (f32 block)
    # len_ref:    [TILE_N, 1]      int32 sequence lengths
    # wih_ref:    [E, 128]         packed (r|z|n) input weights, bf16, zero lanes 3H:
    # whh_ref:    [H, 128]         packed (r|z|n) hidden weights, bf16
    # bacc_ref:   [1, 128]         [b_ir+b_hr | b_iz+b_hz | b_in | 0]
    # bhn_ref:    [1, H]           b_hn (kept separate: n uses r*(h_n + b_hn))
    # fcw_ref:    [H, H] bf16; fcb/lng/lnb: [1, H] f32
    # clsw_ref:   [H, Cp] bf16; clsb_ref: [1, Cp] f32 (padded cols are zero)
    # fea_ref:    [SLM, TILE_N, H] lang_fea output; also the cap staging buffer
    # last_ref:   [TILE_N, H]      hidden at last valid step (lang_emb)
    # scores_ref: [TILE_N, Cp]     classifier logits (padded lanes exactly zero)
    # ix_scratch: [T*TILE_N, 128]  hoisted packed input projections
    E = x_ref.shape[-1]

    # ---- hoisted input-to-hidden projection: ONE bf16 matmul for all steps --
    x2 = x_ref[...].reshape(T * TILE_N, E).astype(jnp.bfloat16)
    ix_scratch[...] = jnp.dot(x2, wih_ref[...],
                              preferred_element_type=jnp.float32) + bacc_ref[...]

    lens = len_ref[...]                             # [TILE_N, 1] int32
    b_hn = bhn_ref[...]                             # [1, H]
    whh = whh_ref[...]                              # [H, 128] bf16 (loop-invariant)

    # validity masks hoisted out of the unrolled recurrence (review item)
    valids = [lens > t for t in range(T)]           # each [TILE_N, 1] bool

    # zero the padded timesteps T..SLM once (pad_packed total_length semantics)
    for t in range(T, SLM):
        fea_ref[t] = jnp.zeros((TILE_N, H), jnp.float32)

    # ---- serial recurrence: per step only h @ W_hh = ONE 128-lane MXU tile --
    # NOTE: W_hh is loop-invariant across the statically-unrolled steps;
    # explicit MXU weight residency (pltpu.matmul_push_rhs/...) is deferred
    # pending a bundle-dump check that Mosaic does not already hoist the push.
    h = jnp.zeros((TILE_N, H), jnp.float32)
    for t in range(T):
        ix_t = ix_scratch[t * TILE_N:(t + 1) * TILE_N, :]       # [TILE_N, 128]
        hh = jnp.dot(h.astype(jnp.bfloat16), whh,
                     preferred_element_type=jnp.float32)        # [TILE_N, 128]
        g = ix_t + hh                                           # r|z pre-acts
        r = jax.nn.sigmoid(g[:, 0:H])
        z = jax.nn.sigmoid(g[:, H:2 * H])
        n = jnp.tanh(ix_t[:, 2 * H:3 * H] + r * (hh[:, 2 * H:3 * H] + b_hn))
        h_new = (1.0 - z) * n + z * h                           # [TILE_N, H] f32
        valid = valids[t]
        h = jnp.where(valid, h_new, h)              # freeze past sequence length
        fea_ref[t] = jnp.where(valid, h_new, 0.0)   # cap_emb staged in fea_ref

    # ---- fc + ReLU + (eval Dropout) + LayerNorm, fused, in place in fea -----
    cap = fea_ref[...].reshape(SLM * TILE_N, H)
    y = jnp.dot(cap.astype(jnp.bfloat16), fcw_ref[...],
                preferred_element_type=jnp.float32) + fcb_ref[...]
    y = jnp.maximum(y, 0.0)
    mean = jnp.mean(y, axis=-1, keepdims=True)
    yc = y - mean
    var = jnp.mean(yc * yc, axis=-1, keepdims=True)             # centered (stable)
    ln = yc * jax.lax.rsqrt(var + 1e-5) * lng_ref[...] + lnb_ref[...]
    fea_ref[...] = ln.reshape(SLM, TILE_N, H)

    # ---- lang_last + classifier (Dropout = identity in eval) ----------------
    last_ref[...] = h
    scores_ref[...] = jnp.dot(h.astype(jnp.bfloat16), clsw_ref[...],
                              preferred_element_type=jnp.float32) + clsb_ref[...]


# ---------------------------------------------------------------------------
# Wrapper: full LangModule.forward (inference path)
# ---------------------------------------------------------------------------
@functools.partial(jax.jit, static_argnames=("sent_len_max",))
def lang_module_forward(params, word_embs, lang_len, *, sent_len_max):
    B, L, T, E = word_embs.shape
    N = B * L
    H = params["gru_w_hh"].shape[-1]
    C = params["cls_w"].shape[-1]
    SLM = sent_len_max
    assert T <= SLM
    assert 3 * H <= GATE_PACK, "gate packing assumes 3*H fits one 128-lane tile"
    Cp = _round_up(C, 128)
    Np = _round_up(N, TILE_N)
    n_tiles = Np // TILE_N

    x = word_embs.reshape(N, T, E).astype(jnp.float32)
    lens = lang_len.reshape(N).astype(jnp.int32)

    # batch pad to a tile multiple; padded rows get length 0 (stay zero)
    x_p = jnp.pad(x, ((0, Np - N), (0, 0), (0, 0)))
    lens_p = jnp.pad(lens, (0, Np - N))
    # time-major [T, Np, E]; the per-tile flatten happens inside the kernel.
    # (At real batch sizes this transpose should be folded into the producer or
    #  replaced with batch-major BlockSpec blocks; at this size it is trivial.)
    x_tm = jnp.transpose(x_p, (1, 0, 2))
    lens_col = lens_p[:, None]

    # ---- pack + lane-pad parameters (r|z|n in ONE 128-lane tile) ------------
    w_ih, w_hh = params["gru_w_ih"], params["gru_w_hh"]
    b_ih, b_hh = params["gru_b_ih"], params["gru_b_hh"]
    wih_p = _pad_to(jnp.concatenate([w_ih[0], w_ih[1], w_ih[2]], axis=1),
                    (E, GATE_PACK)).astype(jnp.bfloat16)          # [E, 128]
    whh_p = _pad_to(jnp.concatenate([w_hh[0], w_hh[1], w_hh[2]], axis=1),
                    (H, GATE_PACK)).astype(jnp.bfloat16)          # [H, 128]
    b_acc = _pad_to(jnp.concatenate([b_ih[0] + b_hh[0],
                                     b_ih[1] + b_hh[1],
                                     b_ih[2]], axis=1), (1, GATE_PACK))
    b_hn = b_hh[2]                                                # [1, H]
    fc_w_p = params["fc_w"].astype(jnp.bfloat16)                  # [H, H]
    fc_b_p = params["fc_b"]
    ln_g_p = params["ln_g"]
    ln_b_p = params["ln_b"]
    cls_w_p = _pad_to(params["cls_w"], (H, Cp)).astype(jnp.bfloat16)
    cls_b_p = _pad_to(params["cls_b"], (1, Cp))

    kernel = functools.partial(lang_kernel, T=T, SLM=SLM, H=H, TILE_N=TILE_N)
    fea_tm, last_p, scores_p = pl.pallas_call(
        kernel,
        out_shape=(jax.ShapeDtypeStruct((SLM, Np, H), jnp.float32),
                   jax.ShapeDtypeStruct((Np, H), jnp.float32),
                   jax.ShapeDtypeStruct((Np, Cp), jnp.float32)),
        grid=(n_tiles,),
        in_specs=[
            pl.BlockSpec((T, TILE_N, E), lambda i: (0, i, 0)),    # x (time-major)
            pl.BlockSpec((TILE_N, 1), lambda i: (i, 0)),          # lengths
            pl.BlockSpec((E, GATE_PACK), lambda i: (0, 0)),       # W_ih packed
            pl.BlockSpec((H, GATE_PACK), lambda i: (0, 0)),       # W_hh packed
            pl.BlockSpec((1, GATE_PACK), lambda i: (0, 0)),       # packed biases
            pl.BlockSpec((1, H), lambda i: (0, 0)),               # b_hn
            pl.BlockSpec((H, H), lambda i: (0, 0)),               # fc_w
            pl.BlockSpec((1, H), lambda i: (0, 0)),               # fc_b
            pl.BlockSpec((1, H), lambda i: (0, 0)),               # ln_g
            pl.BlockSpec((1, H), lambda i: (0, 0)),               # ln_b
            pl.BlockSpec((H, Cp), lambda i: (0, 0)),              # cls_w
            pl.BlockSpec((1, Cp), lambda i: (0, 0)),              # cls_b
        ],
        out_specs=(
            pl.BlockSpec((SLM, TILE_N, H), lambda i: (0, i, 0)),  # lang_fea
            pl.BlockSpec((TILE_N, H), lambda i: (i, 0)),          # lang_emb
            pl.BlockSpec((TILE_N, Cp), lambda i: (i, 0)),         # lang_scores
        ),
        scratch_shapes=[pltpu.VMEM((T * TILE_N, GATE_PACK), jnp.float32)],
        compiler_params=pltpu.CompilerParams(
            dimension_semantics=("parallel",),
            vmem_limit_bytes=32 * 1024 * 1024),
    )(x_tm, lens_col, wih_p, whh_p, b_acc, b_hn,
      fc_w_p, fc_b_p, ln_g_p, ln_b_p, cls_w_p, cls_b_p)

    # strip batch padding; transpose fea back to the batch_first convention
    lang_fea = jnp.transpose(fea_tm, (1, 0, 2))[:N]               # [N, SLM, H]
    lang_emb = last_p[:N]                                         # [N, H]
    lang_scores = scores_p[:N, :C]                                # [N, C]
    attention_mask = (jnp.arange(SLM)[None, :] >= lens[:, None])[:, None, None, :]

    return {"attention_mask": attention_mask,
            "lang_fea": lang_fea,
            "lang_emb": lang_emb,
            "lang_scores": lang_scores}


# ---------------------------------------------------------------------------
# Pure-JAX reference (unpacked / unpadded params; bf16 casts mirrored at the
# matmul boundaries so the tolerance check is tight).
# ---------------------------------------------------------------------------
def reference_forward(params, word_embs, lang_len, sent_len_max):
    B, L, T, E = word_embs.shape
    N = B * L
    H = params["gru_w_hh"].shape[-1]
    x = word_embs.reshape(N, T, E).astype(jnp.float32)
    lens = lang_len.reshape(N).astype(jnp.int32)
    w_ih = params["gru_w_ih"].astype(jnp.bfloat16)
    w_hh = params["gru_w_hh"].astype(jnp.bfloat16)
    b_ih, b_hh = params["gru_b_ih"], params["gru_b_hh"]
    xb = x.astype(jnp.bfloat16)

    def step(h, t):
        x_t = xb[:, t, :]
        hb = h.astype(jnp.bfloat16)
        i_r = jnp.dot(x_t, w_ih[0], preferred_element_type=jnp.float32) + (b_ih[0] + b_hh[0])
        i_z = jnp.dot(x_t, w_ih[1], preferred_element_type=jnp.float32) + (b_ih[1] + b_hh[1])
        i_n = jnp.dot(x_t, w_ih[2], preferred_element_type=jnp.float32) + b_ih[2]
        h_r = jnp.dot(hb, w_hh[0], preferred_element_type=jnp.float32)
        h_z = jnp.dot(hb, w_hh[1], preferred_element_type=jnp.float32)
        h_n = jnp.dot(hb, w_hh[2], preferred_element_type=jnp.float32) + b_hh[2]
        r = jax.nn.sigmoid(i_r + h_r)
        z = jax.nn.sigmoid(i_z + h_z)
        n = jnp.tanh(i_n + r * h_n)
        h_new = (1.0 - z) * n + z * h
        valid = (t < lens)[:, None]
        return jnp.where(valid, h_new, h), jnp.where(valid, h_new, 0.0)

    h_last, outs = jax.lax.scan(step, jnp.zeros((N, H), jnp.float32), jnp.arange(T))
    cap_emb = jnp.transpose(outs, (1, 0, 2))                  # [N, T, H]
    if T < sent_len_max:
        cap_emb = jnp.pad(cap_emb, ((0, 0), (0, sent_len_max - T), (0, 0)))
    y = jnp.dot(cap_emb.astype(jnp.bfloat16), params["fc_w"].astype(jnp.bfloat16),
                preferred_element_type=jnp.float32) + params["fc_b"][0]
    y = jnp.maximum(y, 0.0)
    mean = jnp.mean(y, axis=-1, keepdims=True)
    yc = y - mean
    var = jnp.mean(yc * yc, axis=-1, keepdims=True)
    lang_fea = yc * jax.lax.rsqrt(var + 1e-5) * params["ln_g"][0] + params["ln_b"][0]
    lang_scores = jnp.dot(h_last.astype(jnp.bfloat16), params["cls_w"].astype(jnp.bfloat16),
                          preferred_element_type=jnp.float32) + params["cls_b"][0]
    return {"lang_fea": lang_fea, "lang_emb": h_last, "lang_scores": lang_scores}


if __name__ == "__main__":
    # Small synthetic configuration (consistent with the module's forward):
    B, L = 2, 3               # batch, descriptions per sample
    T = 8                     # max_des_len
    SENT_LEN_MAX = 8
    E = 32                    # emb_size (scaled down from 300)
    H = 32                    # hidden_size (scaled down; fc/layernorm dim == H)
    C = 4                     # num_text_classes

    key = jax.random.PRNGKey(0)
    ks = jax.random.split(key, 12)
    s = 0.1
    params = {
        "gru_w_ih": jax.random.normal(ks[0], (3, E, H), jnp.float32) * s,
        "gru_w_hh": jax.random.normal(ks[1], (3, H, H), jnp.float32) * s,
        "gru_b_ih": jax.random.normal(ks[2], (3, 1, H), jnp.float32) * s,
        "gru_b_hh": jax.random.normal(ks[3], (3, 1, H), jnp.float32) * s,
        "fc_w":     jax.random.normal(ks[4], (H, H), jnp.float32) * s,
        "fc_b":     jax.random.normal(ks[5], (1, H), jnp.float32) * s,
        "ln_g":     jnp.ones((1, H), jnp.float32),
        "ln_b":     jnp.zeros((1, H), jnp.float32),
        "cls_w":    jax.random.normal(ks[6], (H, C), jnp.float32) * s,
        "cls_b":    jax.random.normal(ks[7], (1, C), jnp.float32) * s,
    }

    word_embs = jax.random.normal(ks[8], (B, L, T, E), jnp.float32)
    lang_len = jnp.array([[8, 5, 3], [6, 2, 7]], dtype=jnp.int32)   # [B, L]

    out = lang_module_forward(params, word_embs, lang_len, sent_len_max=SENT_LEN_MAX)
    jax.block_until_ready(out)

    ref = reference_forward(params, word_embs, lang_len, SENT_LEN_MAX)
    assert out["attention_mask"].shape == (B * L, 1, 1, SENT_LEN_MAX)
    assert out["lang_fea"].shape == (B * L, SENT_LEN_MAX, H)
    assert out["lang_emb"].shape == (B * L, H)
    assert out["lang_scores"].shape == (B * L, C)
    for k in ("lang_fea", "lang_emb", "lang_scores"):
        assert jnp.allclose(out[k], ref[k], atol=1e-3, rtol=1e-3), k

    print("KERNEL_OK")
</pallas_src>

<mosaic_0001>
module attributes {stable_mosaic.version = 11 : i64} {
  func.func @lang_kernel(%arg0: i32, %arg1: memref<8x8x32xf32, #tpu.memory_space<vmem>>, %arg2: memref<8x1xi32, #tpu.memory_space<vmem>>, %arg3: memref<32x128xbf16, #tpu.memory_space<vmem>>, %arg4: memref<32x128xbf16, #tpu.memory_space<vmem>>, %arg5: memref<1x128xf32, #tpu.memory_space<vmem>>, %arg6: memref<1x32xf32, #tpu.memory_space<vmem>>, %arg7: memref<32x32xbf16, #tpu.memory_space<vmem>>, %arg8: memref<1x32xf32, #tpu.memory_space<vmem>>, %arg9: memref<1x32xf32, #tpu.memory_space<vmem>>, %arg10: memref<1x32xf32, #tpu.memory_space<vmem>>, %arg11: memref<32x128xbf16, #tpu.memory_space<vmem>>, %arg12: memref<1x128xf32, #tpu.memory_space<vmem>>, %arg13: memref<8x8x32xf32, #tpu.memory_space<vmem>>, %arg14: memref<8x32xf32, #tpu.memory_space<vmem>>, %arg15: memref<8x128xf32, #tpu.memory_space<vmem>>, %arg16: memref<64x128xf32, #tpu.memory_space<vmem>>) attributes {dimension_semantics = [#tpu.dimension_semantics<parallel>], iteration_bounds = array<i64: 1>, scalar_prefetch = 0 : i64, scratch_operands = 1 : i64, tpu.core_type = #tpu.core_type<tc>, window_params = [{transform_indices = @transform_0, window_bounds = array<i64: 8, 8, 32>}, {transform_indices = @transform_1, window_bounds = array<i64: 8, 1>}, {pipeline_mode = #tpu.pipeline_mode<synchronous>, transform_indices = @transform_2, window_bounds = array<i64: 32, 128>}, {pipeline_mode = #tpu.pipeline_mode<synchronous>, transform_indices = @transform_3, window_bounds = array<i64: 32, 128>}, {pipeline_mode = #tpu.pipeline_mode<synchronous>, transform_indices = @transform_4, window_bounds = array<i64: 1, 128>}, {pipeline_mode = #tpu.pipeline_mode<synchronous>, transform_indices = @transform_5, window_bounds = array<i64: 1, 32>}, {pipeline_mode = #tpu.pipeline_mode<synchronous>, transform_indices = @transform_6, window_bounds = array<i64: 32, 32>}, {pipeline_mode = #tpu.pipeline_mode<synchronous>, transform_indices = @transform_7, window_bounds = array<i64: 1, 32>}, {pipeline_mode = #tpu.pipeline_mode<synchronous>, transform_indices = @transform_8, window_bounds = array<i64: 1, 32>}, {pipeline_mode = #tpu.pipeline_mode<synchronous>, transform_indices = @transform_9, window_bounds = array<i64: 1, 32>}, {pipeline_mode = #tpu.pipeline_mode<synchronous>, transform_indices = @transform_10, window_bounds = array<i64: 32, 128>}, {pipeline_mode = #tpu.pipeline_mode<synchronous>, transform_indices = @transform_11, window_bounds = array<i64: 1, 128>}, {transform_indices = @transform_12, window_bounds = array<i64: 8, 8, 32>}, {transform_indices = @transform_13, window_bounds = array<i64: 8, 32>}, {transform_indices = @transform_14, window_bounds = array<i64: 8, 128>}]} {
    %c0 = arith.constant 0 : index
    %c0_0 = arith.constant 0 : index
    %c0_1 = arith.constant 0 : index
    %0 = vector.load %arg1[%c0, %c0_0, %c0_1] : memref<8x8x32xf32, #tpu.memory_space<vmem>>, vector<8x8x32xf32>
    %1 = vector.shape_cast %0 : vector<8x8x32xf32> to vector<64x32xf32>
    %2 = arith.truncf %1 : vector<64x32xf32> to vector<64x32xbf16>
    %c0_2 = arith.constant 0 : index
    %c0_3 = arith.constant 0 : index
    %3 = vector.load %arg3[%c0_2, %c0_3] : memref<32x128xbf16, #tpu.memory_space<vmem>>, vector<32x128xbf16>
    %cst = arith.constant dense<0.000000e+00> : vector<64x128xf32>
    %4 = tpu.matmul %2, %3, %cst {dimension_numbers = #tpu.dot_dimension_numbers<[1], [0], [0], [1], [0, 0, 1, 1], [], []>} : vector<64x32xbf16>, vector<32x128xbf16>, vector<64x128xf32> -> vector<64x128xf32>
    %c0_4 = arith.constant 0 : index
    %c0_5 = arith.constant 0 : index
    %5 = vector.load %arg5[%c0_4, %c0_5] : memref<1x128xf32, #tpu.memory_space<vmem>>, vector<1x128xf32>
    %6 = vector.broadcast %5 : vector<1x128xf32> to vector<64x128xf32>
    %7 = arith.addf %4, %6 : vector<64x128xf32>
    %c0_6 = arith.constant 0 : index
    %c0_7 = arith.constant 0 : index
    %8 = vector.load %arg16[%c0_6, %c0_7] : memref<64x128xf32, #tpu.memory_space<vmem>>, vector<64x128xf32>
    tpu.vector_store %arg16[%c0_6, %c0_7], %7 {strides = array<i32>} : memref<64x128xf32, #tpu.memory_space<vmem>>, vector<64x128xf32>,
    %c0_8 = arith.constant 0 : index
    %c0_9 = arith.constant 0 : index
    %9 = vector.load %arg2[%c0_8, %c0_9] : memref<8x1xi32, #tpu.memory_space<vmem>>, vector<8x1xi32>
    %c0_10 = arith.constant 0 : index
    %c0_11 = arith.constant 0 : index
    %10 = vector.load %arg6[%c0_10, %c0_11] : memref<1x32xf32, #tpu.memory_space<vmem>>, vector<1x32xf32>
    %c0_12 = arith.constant 0 : index
    %c0_13 = arith.constant 0 : index
    %11 = vector.load %arg4[%c0_12, %c0_13] : memref<32x128xbf16, #tpu.memory_space<vmem>>, vector<32x128xbf16>
    %c0_i32 = arith.constant 0 : i32
    %12 = vector.broadcast %c0_i32 : i32 to vector<8x1xi32>
    %13 = arith.cmpi sgt, %9, %12 : vector<8x1xi32>
    %c1_i32 = arith.constant 1 : i32
    %14 = vector.broadcast %c1_i32 : i32 to vector<8x1xi32>
    %15 = arith.cmpi sgt, %9, %14 : vector<8x1xi32>
    %c2_i32 = arith.constant 2 : i32
    %16 = vector.broadcast %c2_i32 : i32 to vector<8x1xi32>
    %17 = arith.cmpi sgt, %9, %16 : vector<8x1xi32>
    %c3_i32 = arith.constant 3 : i32
    %18 = vector.broadcast %c3_i32 : i32 to vector<8x1xi32>
    %19 = arith.cmpi sgt, %9, %18 : vector<8x1xi32>
    %c4_i32 = arith.constant 4 : i32
    %20 = vector.broadcast %c4_i32 : i32 to vector<8x1xi32>
    %21 = arith.cmpi sgt, %9, %20 : vector<8x1xi32>
    %c5_i32 = arith.constant 5 : i32
    %22 = vector.broadcast %c5_i32 : i32 to vector<8x1xi32>
    %23 = arith.cmpi sgt, %9, %22 : vector<8x1xi32>
    %c6_i32 = arith.constant 6 : i32
    %24 = vector.broadcast %c6_i32 : i32 to vector<8x1xi32>
    %25 = arith.cmpi sgt, %9, %24 : vector<8x1xi32>
    %c7_i32 = arith.constant 7 : i32
    %26 = vector.broadcast %c7_i32 : i32 to vector<8x1xi32>
    %27 = arith.cmpi sgt, %9, %26 : vector<8x1xi32>
    %cst_14 = arith.constant 0.000000e+00 : f32
    %28 = vector.broadcast %cst_14 : f32 to vector<8x32xf32>
    %c0_15 = arith.constant 0 : index
    %c0_16 = arith.constant 0 : index
    %29 = vector.load %arg16[%c0_15, %c0_16] : memref<64x128xf32, #tpu.memory_space<vmem>>, vector<8x128xf32>
    %30 = arith.truncf %28 : vector<8x32xf32> to vector<8x32xbf16>
    %cst_17 = arith.constant dense<0.000000e+00> : vector<8x128xf32>
    %31 = tpu.matmul %30, %11, %cst_17 {dimension_numbers = #tpu.dot_dimension_numbers<[1], [0], [0], [1], [0, 0, 1, 1], [], []>} : vector<8x32xbf16>, vector<32x128xbf16>, vector<8x128xf32> -> vector<8x128xf32>
    %32 = arith.addf %29, %31 : vector<8x128xf32>
    %33 = vector.extract_strided_slice %32 {offsets = [0, 0], sizes = [8, 32], strides = [1, 1]} : vector<8x128xf32> to vector<8x32xf32>
    %34 = arith.negf %33 : vector<8x32xf32>
    %35 = math.exp %34 : vector<8x32xf32>
    %cst_18 = arith.constant 1.000000e+00 : f32
    %36 = vector.broadcast %cst_18 : f32 to vector<8x32xf32>
    %37 = arith.addf %36, %35 : vector<8x32xf32>
    %38 = arith.divf %36, %37 : vector<8x32xf32>
    %39 = vector.extract_strided_slice %32 {offsets = [0, 32], sizes = [8, 32], strides = [1, 1]} : vector<8x128xf32> to vector<8x32xf32>
    %40 = arith.negf %39 : vector<8x32xf32>
    %41 = math.exp %40 : vector<8x32xf32>
    %cst_19 = arith.constant 1.000000e+00 : f32
    %42 = vector.broadcast %cst_19 : f32 to vector<8x32xf32>
    %43 = arith.addf %42, %41 : vector<8x32xf32>
    %44 = arith.divf %42, %43 : vector<8x32xf32>
    %45 = vector.extract_strided_slice %29 {offsets = [0, 64], sizes = [8, 32], strides = [1, 1]} : vector<8x128xf32> to vector<8x32xf32>
    %46 = vector.extract_strided_slice %31 {offsets = [0, 64], sizes = [8, 32], strides = [1, 1]} : vector<8x128xf32> to vector<8x32xf32>
    %47 = vector.broadcast %10 : vector<1x32xf32> to vector<8x32xf32>
    %48 = arith.addf %46, %47 : vector<8x32xf32>
    %49 = arith.mulf %38, %48 : vector<8x32xf32>
    %50 = arith.addf %45, %49 : vector<8x32xf32>
    %51 = math.tanh %50 : vector<8x32xf32>
    %cst_20 = arith.constant 1.000000e+00 : f32
    %52 = vector.broadcast %cst_20 : f32 to vector<8x32xf32>
    %53 = arith.subf %52, %44 : vector<8x32xf32>
    %54 = arith.mulf %53, %51 : vector<8x32xf32>
    %55 = arith.mulf %44, %28 : vector<8x32xf32>
    %56 = arith.addf %54, %55 : vector<8x32xf32>
    %57 = vector.shape_cast %13 : vector<8x1xi1> to vector<8x1xi1>
    %58 = vector.broadcast %57 : vector<8x1xi1> to vector<8x32xi1>
    %59 = arith.select %58, %56, %28 : vector<8x32xi1>, vector<8x32xf32>
    %cst_21 = arith.constant 0.000000e+00 : f32
    %60 = vector.shape_cast %13 : vector<8x1xi1> to vector<8x1xi1>
    %61 = vector.broadcast %60 : vector<8x1xi1> to vector<8x32xi1>
    %62 = vector.broadcast %cst_21 : f32 to vector<8x32xf32>
    %63 = arith.select %61, %56, %62 : vector<8x32xi1>, vector<8x32xf32>
    %c0_22 = arith.constant 0 : index
    %c0_23 = arith.constant 0 : index
    %c0_24 = arith.constant 0 : index
    %64 = vector.load %arg13[%c0_22, %c0_23, %c0_24] : memref<8x8x32xf32, #tpu.memory_space<vmem>>, vector<1x8x32xf32>
    %65 = vector.shape_cast %64 : vector<1x8x32xf32> to vector<8x32xf32>
    %66 = vector.shape_cast %63 : vector<8x32xf32> to vector<1x8x32xf32>
    tpu.vector_store %arg13[%c0_22, %c0_23, %c0_24], %66 {strides = array<i32>} : memref<8x8x32xf32, #tpu.memory_space<vmem>>, vector<1x8x32xf32>,
    %c8 = arith.constant 8 : index
    %c0_25 = arith.constant 0 : index
    %67 = vector.load %arg16[%c8, %c0_25] : memref<64x128xf32, #tpu.memory_space<vmem>>, vector<8x128xf32>
    %68 = arith.truncf %59 : vector<8x32xf32> to vector<8x32xbf16>
    %cst_26 = arith.constant dense<0.000000e+00> : vector<8x128xf32>
    %69 = tpu.matmul %68, %11, %cst_26 {dimension_numbers = #tpu.dot_dimension_numbers<[1], [0], [0], [1], [0, 0, 1, 1], [], []>} : vector<8x32xbf16>, vector<32x128xbf16>, vector<8x128xf32> -> vector<8x128xf32>
    %70 = arith.addf %67, %69 : vector<8x128xf32>
    %71 = vector.extract_strided_slice %70 {offsets = [0, 0], sizes = [8, 32], strides = [1, 1]} : vector<8x128xf32> to vector<8x32xf32>
    %72 = arith.negf %71 : vector<8x32xf32>
    %73 = math.exp %72 : vector<8x32xf32>
    %cst_27 = arith.constant 1.000000e+00 : f32
    %74 = vector.broadcast %cst_27 : f32 to vector<8x32xf32>
    %75 = arith.addf %74, %73 : vector<8x32xf32>
    %76 = arith.divf %74, %75 : vector<8x32xf32>
    %77 = vector.extract_strided_slice %70 {offsets = [0, 32], sizes = [8, 32], strides = [1, 1]} : vector<8x128xf32> to vector<8x32xf32>
    %78 = arith.negf %77 : vector<8x32xf32>
    %79 = math.exp %78 : vector<8x32xf32>
    %cst_28 = arith.constant 1.000000e+00 : f32
    %80 = vector.broadcast %cst_28 : f32 to vector<8x32xf32>
    %81 = arith.addf %80, %79 : vector<8x32xf32>
    %82 = arith.divf %80, %81 : vector<8x32xf32>
    %83 = vector.extract_strided_slice %67 {offsets = [0, 64], sizes = [8, 32], strides = [1, 1]} : vector<8x128xf32> to vector<8x32xf32>
    %84 = vector.extract_strided_slice %69 {offsets = [0, 64], sizes = [8, 32], strides = [1, 1]} : vector<8x128xf32> to vector<8x32xf32>
    %85 = vector.broadcast %10 : vector<1x32xf32> to vector<8x32xf32>
    %86 = arith.addf %84, %85 : vector<8x32xf32>
    %87 = arith.mulf %76, %86 : vector<8x32xf32>
    %88 = arith.addf %83, %87 : vector<8x32xf32>
    %89 = math.tanh %88 : vector<8x32xf32>
    %cst_29 = arith.constant 1.000000e+00 : f32
    %90 = vector.broadcast %cst_29 : f32 to vector<8x32xf32>
    %91 = arith.subf %90, %82 : vector<8x32xf32>
    %92 = arith.mulf %91, %89 : vector<8x32xf32>
    %93 = arith.mulf %82, %59 : vector<8x32xf32>
    %94 = arith.addf %92, %93 : vector<8x32xf32>
    %95 = vector.shape_cast %15 : vector<8x1xi1> to vector<8x1xi1>
    %96 = vector.broadcast %95 : vector<8x1xi1> to vector<8x32xi1>
    %97 = arith.select %96, %94, %59 : vector<8x32xi1>, vector<8x32xf32>
    %cst_30 = arith.constant 0.000000e+00 : f32
    %98 = vector.shape_cast %15 : vector<8x1xi1> to vector<8x1xi1>
    %99 = vector.broadcast %98 : vector<8x1xi1> to vector<8x32xi1>
    %100 = vector.broadcast %cst_30 : f32 to vector<8x32xf32>
    %101 = arith.select %99, %94, %100 : vector<8x32xi1>, vector<8x32xf32>
    %c1 = arith.constant 1 : index
    %c0_31 = arith.constant 0 : index
    %c0_32 = arith.constant 0 : index
    %102 = vector.load %arg13[%c1, %c0_31, %c0_32] : memref<8x8x32xf32, #tpu.memory_space<vmem>>, vector<1x8x32xf32>
    %103 = vector.shape_cast %102 : vector<1x8x32xf32> to vector<8x32xf32>
    %104 = vector.shape_cast %101 : vector<8x32xf32> to vector<1x8x32xf32>
    tpu.vector_store %arg13[%c1, %c0_31, %c0_32], %104 {strides = array<i32>} : memref<8x8x32xf32, #tpu.memory_space<vmem>>, vector<1x8x32xf32>,
    %c16 = arith.constant 16 : index
    %c0_33 = arith.constant 0 : index
    %105 = vector.load %arg16[%c16, %c0_33] : memref<64x128xf32, #tpu.memory_space<vmem>>, vector<8x128xf32>
    %106 = arith.truncf %97 : vector<8x32xf32> to vector<8x32xbf16>
    %cst_34 = arith.constant dense<0.000000e+00> : vector<8x128xf32>
    %107 = tpu.matmul %106, %11, %cst_34 {dimension_numbers = #tpu.dot_dimension_numbers<[1], [0], [0], [1], [0, 0, 1, 1], [], []>} : vector<8x32xbf16>, vector<32x128xbf16>, vector<8x128xf32> -> vector<8x128xf32>
    %108 = arith.addf %105, %107 : vector<8x128xf32>
    %109 = vector.extract_strided_slice %108 {offsets = [0, 0], sizes = [8, 32], strides = [1, 1]} : vector<8x128xf32> to vector<8x32xf32>
    %110 = arith.negf %109 : vector<8x32xf32>
    %111 = math.exp %110 : vector<8x32xf32>
    %cst_35 = arith.constant 1.000000e+00 : f32
    %112 = vector.broadcast %cst_35 : f32 to vector<8x32xf32>
    %113 = arith.addf %112, %111 : vector<8x32xf32>
    %114 = arith.divf %112, %113 : vector<8x32xf32>
    %115 = vector.extract_strided_slice %108 {offsets = [0, 32], sizes = [8, 32], strides = [1, 1]} : vector<8x128xf32> to vector<8x32xf32>
    %116 = arith.negf %115 : vector<8x32xf32>
    %117 = math.exp %116 : vector<8x32xf32>
    %cst_36 = arith.constant 1.000000e+00 : f32
    %118 = vector.broadcast %cst_36 : f32 to vector<8x32xf32>
    %119 = arith.addf %118, %117 : vector<8x32xf32>
    %120 = arith.divf %118, %119 : vector<8x32xf32>
    %121 = vector.extract_strided_slice %105 {offsets = [0, 64], sizes = [8, 32], strides = [1, 1]} : vector<8x128xf32> to vector<8x32xf32>
    %122 = vector.extract_strided_slice %107 {offsets = [0, 64], sizes = [8, 32], strides = [1, 1]} : vector<8x128xf32> to vector<8x32xf32>
    %123 = vector.broadcast %10 : vector<1x32xf32> to vector<8x32xf32>
    %124 = arith.addf %122, %123 : vector<8x32xf32>
    %125 = arith.mulf %114, %124 : vector<8x32xf32>
    %126 = arith.addf %121, %125 : vector<8x32xf32>
    %127 = math.tanh %126 : vector<8x32xf32>
    %cst_37 = arith.constant 1.000000e+00 : f32
    %128 = vector.broadcast %cst_37 : f32 to vector<8x32xf32>
    %129 = arith.subf %128, %120 : vector<8x32xf32>
    %130 = arith.mulf %129, %127 : vector<8x32xf32>
    %131 = arith.mulf %120, %97 : vector<8x32xf32>
    %132 = arith.addf %130, %131 : vector<8x32xf32>
    %133 = vector.shape_cast %17 : vector<8x1xi1> to vector<8x1xi1>
    %134 = vector.broadcast %133 : vector<8x1xi1> to vector<8x32xi1>
    %135 = arith.select %134, %132, %97 : vector<8x32xi1>, vector<8x32xf32>
    %cst_38 = arith.constant 0.000000e+00 : f32
    %136 = vector.shape_cast %17 : vector<8x1xi1> to vector<8x1xi1>
    %137 = vector.broadcast %136 : vector<8x1xi1> to vector<8x32xi1>
    %138 = vector.broadcast %cst_38 : f32 to vector<8x32xf32>
    %139 = arith.select %137, %132, %138 : vector<8x32xi1>, vector<8x32xf32>
    %c2 = arith.constant 2 : index
    %c0_39 = arith.constant 0 : index
    %c0_40 = arith.constant 0 : index
    %140 = vector.load %arg13[%c2, %c0_39, %c0_40] : memref<8x8x32xf32, #tpu.memory_space<vmem>>, vector<1x8x32xf32>
    %141 = vector.shape_cast %140 : vector<1x8x32xf32> to vector<8x32xf32>
    %142 = vector.shape_cast %139 : vector<8x32xf32> to vector<1x8x32xf32>
    tpu.vector_store %arg13[%c2, %c0_39, %c0_40], %142 {strides = array<i32>} : memref<8x8x32xf32, #tpu.memory_space<vmem>>, vector<1x8x32xf32>,
    %c24 = arith.constant 24 : index
    %c0_41 = arith.constant 0 : index
    %143 = vector.load %arg16[%c24, %c0_41] : memref<64x128xf32, #tpu.memory_space<vmem>>, vector<8x128xf32>
    %144 = arith.truncf %135 : vector<8x32xf32> to vector<8x32xbf16>
    %cst_42 = arith.constant dense<0.000000e+00> : vector<8x128xf32>
    %145 = tpu.matmul %144, %11, %cst_42 {dimension_numbers = #tpu.dot_dimension_numbers<[1], [0], [0], [1], [0, 0, 1, 1], [], []>} : vector<8x32xbf16>, vector<32x128xbf16>, vector<8x128xf32> -> vector<8x128xf32>
    %146 = arith.addf %143, %145 : vector<8x128xf32>
    %147 = vector.extract_strided_slice %146 {offsets = [0, 0], sizes = [8, 32], strides = [1, 1]} : vector<8x128xf32> to vector<8x32xf32>
    %148 = arith.negf %147 : vector<8x32xf32>
    %149 = math.exp %148 : vector<8x32xf32>
    %cst_43 = arith.constant 1.000000e+00 : f32
    %150 = vector.broadcast %cst_43 : f32 to vector<8x32xf32>
    %151 = arith.addf %150, %149 : vector<8x32xf32>
    %152 = arith.divf %150, %151 : vector<8x32xf32>
    %153 = vector.extract_strided_slice %146 {offsets = [0, 32], sizes = [8, 32], strides = [1, 1]} : vector<8x128xf32> to vector<8x32xf32>
    %154 = arith.negf %153 : vector<8x32xf32>
    %155 = math.exp %154 : vector<8x32xf32>
    %cst_44 = arith.constant 1.000000e+00 : f32
    %156 = vector.broadcast %cst_44 : f32 to vector<8x32xf32>
    %157 = arith.addf %156, %155 : vector<8x32xf32>
    %158 = arith.divf %156, %157 : vector<8x32xf32>
    %159 = vector.extract_strided_slice %143 {offsets = [0, 64], sizes = [8, 32], strides = [1, 1]} : vector<8x128xf32> to vector<8x32xf32>
    %160 = vector.extract_strided_slice %145 {offsets = [0, 64], sizes = [8, 32], strides = [1, 1]} : vector<8x128xf32> to vector<8x32xf32>
    %161 = vector.broadcast %10 : vector<1x32xf32> to vector<8x32xf32>
    %162 = arith.addf %160, %161 : vector<8x32xf32>
    %163 = arith.mulf %152, %162 : vector<8x32xf32>
    %164 = arith.addf %159, %163 : vector<8x32xf32>
    %165 = math.tanh %164 : vector<8x32xf32>
    %cst_45 = arith.constant 1.000000e+00 : f32
    %166 = vector.broadcast %cst_45 : f32 to vector<8x32xf32>
    %167 = arith.subf %166, %158 : vector<8x32xf32>
    %168 = arith.mulf %167, %165 : vector<8x32xf32>
    %169 = arith.mulf %158, %135 : vector<8x32xf32>
    %170 = arith.addf %168, %169 : vector<8x32xf32>
    %171 = vector.shape_cast %19 : vector<8x1xi1> to vector<8x1xi1>
    %172 = vector.broadcast %171 : vector<8x1xi1> to vector<8x32xi1>
    %173 = arith.select %172, %170, %135 : vector<8x32xi1>, vector<8x32xf32>
    %cst_46 = arith.constant 0.000000e+00 : f32
    %174 = vector.shape_cast %19 : vector<8x1xi1> to vector<8x1xi1>
    %175 = vector.broadcast %174 : vector<8x1xi1> to vector<8x32xi1>
    %176 = vector.broadcast %cst_46 : f32 to vector<8x32xf32>
    %177 = arith.select %175, %170, %176 : vector<8x32xi1>, vector<8x32xf32>
    %c3 = arith.constant 3 : index
    %c0_47 = arith.constant 0 : index
    %c0_48 = arith.constant 0 : index
    %178 = vector.load %arg13[%c3, %c0_47, %c0_48] : memref<8x8x32xf32, #tpu.memory_space<vmem>>, vector<1x8x32xf32>
    %179 = vector.shape_cast %178 : vector<1x8x32xf32> to vector<8x32xf32>
    %180 = vector.shape_cast %177 : vector<8x32xf32> to vector<1x8x32xf32>
    tpu.vector_store %arg13[%c3, %c0_47, %c0_48], %180 {strides = array<i32>} : memref<8x8x32xf32, #tpu.memory_space<vmem>>, vector<1x8x32xf32>,
    %c32 = arith.constant 32 : index
    %c0_49 = arith.constant 0 : index
    %181 = vector.load %arg16[%c32, %c0_49] : memref<64x128xf32, #tpu.memory_space<vmem>>, vector<8x128xf32>
    %182 = arith.truncf %173 : vector<8x32xf32> to vector<8x32xbf16>
    %cst_50 = arith.constant dense<0.000000e+00> : vector<8x128xf32>
    %183 = tpu.matmul %182, %11, %cst_50 {dimension_numbers = #tpu.dot_dimension_numbers<[1], [0], [0], [1], [0, 0, 1, 1], [], []>} : vector<8x32xbf16>, vector<32x128xbf16>, vector<8x128xf32> -> vector<8x128xf32>
    %184 = arith.addf %181, %183 : vector<8x128xf32>
    %185 = vector.extract_strided_slice %184 {offsets = [0, 0], sizes = [8, 32], strides = [1, 1]} : vector<8x128xf32> to vector<8x32xf32>
    %186 = arith.negf %185 : vector<8x32xf32>
    %187 = math.exp %186 : vector<8x32xf32>
    %cst_51 = arith.constant 1.000000e+00 : f32
    %188 = vector.broadcast %cst_51 : f32 to vector<8x32xf32>
    %189 = arith.addf %188, %187 : vector<8x32xf32>
    %190 = arith.divf %188, %189 : vector<8x32xf32>
    %191 = vector.extract_strided_slice %184 {offsets = [0, 32], sizes = [8, 32], strides = [1, 1]} : vector<8x128xf32> to vector<8x32xf32>
    %192 = arith.negf %191 : vector<8x32xf32>
    %193 = math.exp %192 : vector<8x32xf32>
    %cst_52 = arith.constant 1.000000e+00 : f32
    %194 = vector.broadcast %cst_52 : f32 to vector<8x32xf32>
    %195 = arith.addf %194, %193 : vector<8x32xf32>
    %196 = arith.divf %194, %195 : vector<8x32xf32>
    %197 = vector.extract_strided_slice %181 {offsets = [0, 64], sizes = [8, 32], strides = [1, 1]} : vector<8x128xf32> to vector<8x32xf32>
    %198 = vector.extract_strided_slice %183 {offsets = [0, 64], sizes = [8, 32], strides = [1, 1]} : vector<8x128xf32> to vector<8x32xf32>
    %199 = vector.broadcast %10 : vector<1x32xf32> to vector<8x32xf32>
    %200 = arith.addf %198, %199 : vector<8x32xf32>
    %201 = arith.mulf %190, %200 : vector<8x32xf32>
    %202 = arith.addf %197, %201 : vector<8x32xf32>
    %203 = math.tanh %202 : vector<8x32xf32>
    %cst_53 = arith.constant 1.000000e+00 : f32
    %204 = vector.broadcast %cst_53 : f32 to vector<8x32xf32>
    %205 = arith.subf %204, %196 : vector<8x32xf32>
    %206 = arith.mulf %205, %203 : vector<8x32xf32>
    %207 = arith.mulf %196, %173 : vector<8x32xf32>
    %208 = arith.addf %206, %207 : vector<8x32xf32>
    %209 = vector.shape_cast %21 : vector<8x1xi1> to vector<8x1xi1>
    %210 = vector.broadcast %209 : vector<8x1xi1> to vector<8x32xi1>
    %211 = arith.select %210, %208, %173 : vector<8x32xi1>, vector<8x32xf32>
    %cst_54 = arith.constant 0.000000e+00 : f32
    %212 = vector.shape_cast %21 : vector<8x1xi1> to vector<8x1xi1>
    %213 = vector.broadcast %212 : vector<8x1xi1> to vector<8x32xi1>
    %214 = vector.broadcast %cst_54 : f32 to vector<8x32xf32>
    %215 = arith.select %213, %208, %214 : vector<8x32xi1>, vector<8x32xf32>
    %c4 = arith.constant 4 : index
    %c0_55 = arith.constant 0 : index
    %c0_56 = arith.constant 0 : index
    %216 = vector.load %arg13[%c4, %c0_55, %c0_56] : memref<8x8x32xf32, #tpu.memory_space<vmem>>, vector<1x8x32xf32>
    %217 = vector.shape_cast %216 : vector<1x8x32xf32> to vector<8x32xf32>
    %218 = vector.shape_cast %215 : vector<8x32xf32> to vector<1x8x32xf32>
    tpu.vector_store %arg13[%c4, %c0_55, %c0_56], %218 {strides = array<i32>} : memref<8x8x32xf32, #tpu.memory_space<vmem>>, vector<1x8x32xf32>,
    %c40 = arith.constant 40 : index
    %c0_57 = arith.constant 0 : index
    %219 = vector.load %arg16[%c40, %c0_57] : memref<64x128xf32, #tpu.memory_space<vmem>>, vector<8x128xf32>
    %220 = arith.truncf %211 : vector<8x32xf32> to vector<8x32xbf16>
    %cst_58 = arith.constant dense<0.000000e+00> : vector<8x128xf32>
    %221 = tpu.matmul %220, %11, %cst_58 {dimension_numbers = #tpu.dot_dimension_numbers<[1], [0], [0], [1], [0, 0, 1, 1], [], []>} : vector<8x32xbf16>, vector<32x128xbf16>, vector<8x128xf32> -> vector<8x128xf32>
    %222 = arith.addf %219, %221 : vector<8x128xf32>
    %223 = vector.extract_strided_slice %222 {offsets = [0, 0], sizes = [8, 32], strides = [1, 1]} : vector<8x128xf32> to vector<8x32xf32>
    %224 = arith.negf %223 : vector<8x32xf32>
    %225 = math.exp %224 : vector<8x32xf32>
    %cst_59 = arith.constant 1.000000e+00 : f32
    %226 = vector.broadcast %cst_59 : f32 to vector<8x32xf32>
    %227 = arith.addf %226, %225 : vector<8x32xf32>
    %228 = arith.divf %226, %227 : vector<8x32xf32>
    %229 = vector.extract_strided_slice %222 {offsets = [0, 32], sizes = [8, 32], strides = [1, 1]} : vector<8x128xf32> to vector<8x32xf32>
    %230 = arith.negf %229 : vector<8x32xf32>
    %231 = math.exp %230 : vector<8x32xf32>
    %cst_60 = arith.constant 1.000000e+00 : f32
    %232 = vector.broadcast %cst_60 : f32 to vector<8x32xf32>
    %233 = arith.addf %232, %231 : vector<8x32xf32>
    %234 = arith.divf %232, %233 : vector<8x32xf32>
    %235 = vector.extract_strided_slice %219 {offsets = [0, 64], sizes = [8, 32], strides = [1, 1]} : vector<8x128xf32> to vector<8x32xf32>
    %236 = vector.extract_strided_slice %221 {offsets = [0, 64], sizes = [8, 32], strides = [1, 1]} : vector<8x128xf32> to vector<8x32xf32>
    %237 = vector.broadcast %10 : vector<1x32xf32> to vector<8x32xf32>
    %238 = arith.addf %236, %237 : vector<8x32xf32>
    %239 = arith.mulf %228, %238 : vector<8x32xf32>
    %240 = arith.addf %235, %239 : vector<8x32xf32>
    %241 = math.tanh %240 : vector<8x32xf32>
    %cst_61 = arith.constant 1.000000e+00 : f32
    %242 = vector.broadcast %cst_61 : f32 to vector<8x32xf32>
    %243 = arith.subf %242, %234 : vector<8x32xf32>
    %244 = arith.mulf %243, %241 : vector<8x32xf32>
    %245 = arith.mulf %234, %211 : vector<8x32xf32>
    %246 = arith.addf %244, %245 : vector<8x32xf32>
    %247 = vector.shape_cast %23 : vector<8x1xi1> to vector<8x1xi1>
    %248 = vector.broadcast %247 : vector<8x1xi1> to vector<8x32xi1>
    %249 = arith.select %248, %246, %211 : vector<8x32xi1>, vector<8x32xf32>
    %cst_62 = arith.constant 0.000000e+00 : f32
    %250 = vector.shape_cast %23 : vector<8x1xi1> to vector<8x1xi1>
    %251 = vector.broadcast %250 : vector<8x1xi1> to vector<8x32xi1>
    %252 = vector.broadcast %cst_62 : f32 to vector<8x32xf32>
    %253 = arith.select %251, %246, %252 : vector<8x32xi1>, vector<8x32xf32>
    %c5 = arith.constant 5 : index
    %c0_63 = arith.constant 0 : index
    %c0_64 = arith.constant 0 : index
    %254 = vector.load %arg13[%c5, %c0_63, %c0_64] : memref<8x8x32xf32, #tpu.memory_space<vmem>>, vector<1x8x32xf32>
    %255 = vector.shape_cast %254 : vector<1x8x32xf32> to vector<8x32xf32>
    %256 = vector.shape_cast %253 : vector<8x32xf32> to vector<1x8x32xf32>
    tpu.vector_store %arg13[%c5, %c0_63, %c0_64], %256 {strides = array<i32>} : memref<8x8x32xf32, #tpu.memory_space<vmem>>, vector<1x8x32xf32>,
    %c48 = arith.constant 48 : index
    %c0_65 = arith.constant 0 : index
    %257 = vector.load %arg16[%c48, %c0_65] : memref<64x128xf32, #tpu.memory_space<vmem>>, vector<8x128xf32>
    %258 = arith.truncf %249 : vector<8x32xf32> to vector<8x32xbf16>
    %cst_66 = arith.constant dense<0.000000e+00> : vector<8x128xf32>
    %259 = tpu.matmul %258, %11, %cst_66 {dimension_numbers = #tpu.dot_dimension_numbers<[1], [0], [0], [1], [0, 0, 1, 1], [], []>} : vector<8x32xbf16>, vector<32x128xbf16>, vector<8x128xf32> -> vector<8x128xf32>
    %260 = arith.addf %257, %259 : vector<8x128xf32>
    %261 = vector.extract_strided_slice %260 {offsets = [0, 0], sizes = [8, 32], strides = [1, 1]} : vector<8x128xf32> to vector<8x32xf32>
    %262 = arith.negf %261 : vector<8x32xf32>
    %263 = math.exp %262 : vector<8x32xf32>
    %cst_67 = arith.constant 1.000000e+00 : f32
    %264 = vector.broadcast %cst_67 : f32 to vector<8x32xf32>
    %265 = arith.addf %264, %263 : vector<8x32xf32>
    %266 = arith.divf %264, %265 : vector<8x32xf32>
    %267 = vector.extract_strided_slice %260 {offsets = [0, 32], sizes = [8, 32], strides = [1, 1]} : vector<8x128xf32> to vector<8x32xf32>
    %268 = arith.negf %267 : vector<8x32xf32>
    %269 = math.exp %268 : vector<8x32xf32>
    %cst_68 = arith.constant 1.000000e+00 : f32
    %270 = vector.broadcast %cst_68 : f32 to vector<8x32xf32>
    %271 = arith.addf %270, %269 : vector<8x32xf32>
    %272 = arith.divf %270, %271 : vector<8x32xf32>
    %273 = vector.extract_strided_slice %257 {offsets = [0, 64], sizes = [8, 32], strides = [1, 1]} : vector<8x128xf32> to vector<8x32xf32>
    %274 = vector.extract_strided_slice %259 {offsets = [0, 64], sizes = [8, 32], strides = [1, 1]} : vector<8x128xf32> to vector<8x32xf32>
    %275 = vector.broadcast %10 : vector<1x32xf32> to vector<8x32xf32>
    %276 = arith.addf %274, %275 : vector<8x32xf32>
    %277 = arith.mulf %266, %276 : vector<8x32xf32>
    %278 = arith.addf %273, %277 : vector<8x32xf32>
    %279 = math.tanh %278 : vector<8x32xf32>
    %cst_69 = arith.constant 1.000000e+00 : f32
    %280 = vector.broadcast %cst_69 : f32 to vector<8x32xf32>
    %281 = arith.subf %280, %272 : vector<8x32xf32>
    %282 = arith.mulf %281, %279 : vector<8x32xf32>
    %283 = arith.mulf %272, %249 : vector<8x32xf32>
    %284 = arith.addf %282, %283 : vector<8x32xf32>
    %285 = vector.shape_cast %25 : vector<8x1xi1> to vector<8x1xi1>
    %286 = vector.broadcast %285 : vector<8x1xi1> to vector<8x32xi1>
    %287 = arith.select %286, %284, %249 : vector<8x32xi1>, vector<8x32xf32>
    %cst_70 = arith.constant 0.000000e+00 : f32
    %288 = vector.shape_cast %25 : vector<8x1xi1> to vector<8x1xi1>
    %289 = vector.broadcast %288 : vector<8x1xi1> to vector<8x32xi1>
    %290 = vector.broadcast %cst_70 : f32 to vector<8x32xf32>
    %291 = arith.select %289, %284, %290 : vector<8x32xi1>, vector<8x32xf32>
    %c6 = arith.constant 6 : index
    %c0_71 = arith.constant 0 : index
    %c0_72 = arith.constant 0 : index
    %292 = vector.load %arg13[%c6, %c0_71, %c0_72] : memref<8x8x32xf32, #tpu.memory_space<vmem>>, vector<1x8x32xf32>
    %293 = vector.shape_cast %292 : vector<1x8x32xf32> to vector<8x32xf32>
    %294 = vector.shape_cast %291 : vector<8x32xf32> to vector<1x8x32xf32>
    tpu.vector_store %arg13[%c6, %c0_71, %c0_72], %294 {strides = array<i32>} : memref<8x8x32xf32, #tpu.memory_space<vmem>>, vector<1x8x32xf32>,
    %c56 = arith.constant 56 : index
    %c0_73 = arith.constant 0 : index
    %295 = vector.load %arg16[%c56, %c0_73] : memref<64x128xf32, #tpu.memory_space<vmem>>, vector<8x128xf32>
    %296 = arith.truncf %287 : vector<8x32xf32> to vector<8x32xbf16>
    %cst_74 = arith.constant dense<0.000000e+00> : vector<8x128xf32>
    %297 = tpu.matmul %296, %11, %cst_74 {dimension_numbers = #tpu.dot_dimension_numbers<[1], [0], [0], [1], [0, 0, 1, 1], [], []>} : vector<8x32xbf16>, vector<32x128xbf16>, vector<8x128xf32> -> vector<8x128xf32>
    %298 = arith.addf %295, %297 : vector<8x128xf32>
    %299 = vector.extract_strided_slice %298 {offsets = [0, 0], sizes = [8, 32], strides = [1, 1]} : vector<8x128xf32> to vector<8x32xf32>
    %300 = arith.negf %299 : vector<8x32xf32>
    %301 = math.exp %300 : vector<8x32xf32>
    %cst_75 = arith.constant 1.000000e+00 : f32
    %302 = vector.broadcast %cst_75 : f32 to vector<8x32xf32>
    %303 = arith.addf %302, %301 : vector<8x32xf32>
    %304 = arith.divf %302, %303 : vector<8x32xf32>
    %305 = vector.extract_strided_slice %298 {offsets = [0, 32], sizes = [8, 32], strides = [1, 1]} : vector<8x128xf32> to vector<8x32xf32>
    %306 = arith.negf %305 : vector<8x32xf32>
    %307 = math.exp %306 : vector<8x32xf32>
    %cst_76 = arith.constant 1.000000e+00 : f32
    %308 = vector.broadcast %cst_76 : f32 to vector<8x32xf32>
    %309 = arith.addf %308, %307 : vector<8x32xf32>
    %310 = arith.divf %308, %309 : vector<8x32xf32>
    %311 = vector.extract_strided_slice %295 {offsets = [0, 64], sizes = [8, 32], strides = [1, 1]} : vector<8x128xf32> to vector<8x32xf32>
    %312 = vector.extract_strided_slice %297 {offsets = [0, 64], sizes = [8, 32], strides = [1, 1]} : vector<8x128xf32> to vector<8x32xf32>
    %313 = vector.broadcast %10 : vector<1x32xf32> to vector<8x32xf32>
    %314 = arith.addf %312, %313 : vector<8x32xf32>
    %315 = arith.mulf %304, %314 : vector<8x32xf32>
    %316 = arith.addf %311, %315 : vector<8x32xf32>
    %317 = math.tanh %316 : vector<8x32xf32>
    %cst_77 = arith.constant 1.000000e+00 : f32
    %318 = vector.broadcast %cst_77 : f32 to vector<8x32xf32>
    %319 = arith.subf %318, %310 : vector<8x32xf32>
    %320 = arith.mulf %319, %317 : vector<8x32xf32>
    %321 = arith.mulf %310, %287 : vector<8x32xf32>
    %322 = arith.addf %320, %321 : vector<8x32xf32>
    %323 = vector.shape_cast %27 : vector<8x1xi1> to vector<8x1xi1>
    %324 = vector.broadcast %323 : vector<8x1xi1> to vector<8x32xi1>
    %325 = arith.select %324, %322, %287 : vector<8x32xi1>, vector<8x32xf32>
    %cst_78 = arith.constant 0.000000e+00 : f32
    %326 = vector.shape_cast %27 : vector<8x1xi1> to vector<8x1xi1>
    %327 = vector.broadcast %326 : vector<8x1xi1> to vector<8x32xi1>
    %328 = vector.broadcast %cst_78 : f32 to vector<8x32xf32>
    %329 = arith.select %327, %322, %328 : vector<8x32xi1>, vector<8x32xf32>
    %c7 = arith.constant 7 : index
    %c0_79 = arith.constant 0 : index
    %c0_80 = arith.constant 0 : index
    %330 = vector.load %arg13[%c7, %c0_79, %c0_80] : memref<8x8x32xf32, #tpu.memory_space<vmem>>, vector<1x8x32xf32>
    %331 = vector.shape_cast %330 : vector<1x8x32xf32> to vector<8x32xf32>
    %332 = vector.shape_cast %329 : vector<8x32xf32> to vector<1x8x32xf32>
    tpu.vector_store %arg13[%c7, %c0_79, %c0_80], %332 {strides = array<i32>} : memref<8x8x32xf32, #tpu.memory_space<vmem>>, vector<1x8x32xf32>,
    %c0_81 = arith.constant 0 : index
    %c0_82 = arith.constant 0 : index
    %c0_83 = arith.constant 0 : index
    %333 = vector.load %arg13[%c0_81, %c0_82, %c0_83] : memref<8x8x32xf32, #tpu.memory_space<vmem>>, vector<8x8x32xf32>
    %334 = vector.shape_cast %333 : vector<8x8x32xf32> to vector<64x32xf32>
    %335 = arith.truncf %334 : vector<64x32xf32> to vector<64x32xbf16>
    %c0_84 = arith.constant 0 : index
    %c0_85 = arith.constant 0 : index
    %336 = vector.load %arg7[%c0_84, %c0_85] : memref<32x32xbf16, #tpu.memory_space<vmem>>, vector<32x32xbf16>
    %cst_86 = arith.constant dense<0.000000e+00> : vector<64x32xf32>
    %337 = tpu.matmul %335, %336, %cst_86 {dimension_numbers = #tpu.dot_dimension_numbers<[1], [0], [0], [1], [0, 0, 1, 1], [], []>} : vector<64x32xbf16>, vector<32x32xbf16>, vector<64x32xf32> -> vector<64x32xf32>
    %c0_87 = arith.constant 0 : index
    %c0_88 = arith.constant 0 : index
    %338 = vector.load %arg8[%c0_87, %c0_88] : memref<1x32xf32, #tpu.memory_space<vmem>>, vector<1x32xf32>
    %339 = vector.broadcast %338 : vector<1x32xf32> to vector<64x32xf32>
    %340 = arith.addf %337, %339 : vector<64x32xf32>
    %cst_89 = arith.constant 0.000000e+00 : f32
    %341 = vector.broadcast %cst_89 : f32 to vector<64x32xf32>
    %342 = arith.maximumf %340, %341 : vector<64x32xf32>
    %cst_90 = arith.constant dense<0.000000e+00> : vector<64xf32>
    %343 = vector.multi_reduction <add>, %342, %cst_90 [1] : vector<64x32xf32> to vector<64xf32>
    %344 = vector.shape_cast %343 : vector<64xf32> to vector<64x1xf32>
    %cst_91 = arith.constant 3.200000e+01 : f32
    %345 = vector.broadcast %cst_91 : f32 to vector<64x1xf32>
    %346 = arith.divf %344, %345 : vector<64x1xf32>
    %347 = vector.broadcast %346 : vector<64x1xf32> to vector<64x32xf32>
    %348 = arith.subf %342, %347 : vector<64x32xf32>
    %349 = arith.mulf %348, %348 : vector<64x32xf32>
    %cst_92 = arith.constant dense<0.000000e+00> : vector<64xf32>
    %350 = vector.multi_reduction <add>, %349, %cst_92 [1] : vector<64x32xf32> to vector<64xf32>
    %351 = vector.shape_cast %350 : vector<64xf32> to vector<64x1xf32>
    %cst_93 = arith.constant 3.200000e+01 : f32
    %352 = vector.broadcast %cst_93 : f32 to vector<64x1xf32>
    %353 = arith.divf %351, %352 : vector<64x1xf32>
    %cst_94 = arith.constant 9.99999974E-6 : f32
    %354 = vector.broadcast %cst_94 : f32 to vector<64x1xf32>
    %355 = arith.addf %353, %354 : vector<64x1xf32>
    %356 = math.rsqrt %355 : vector<64x1xf32>
    %357 = vector.broadcast %356 : vector<64x1xf32> to vector<64x32xf32>
    %358 = arith.mulf %348, %357 : vector<64x32xf32>
    %c0_95 = arith.constant 0 : index
    %c0_96 = arith.constant 0 : index
    %359 = vector.load %arg9[%c0_95, %c0_96] : memref<1x32xf32, #tpu.memory_space<vmem>>, vector<1x32xf32>
    %360 = vector.broadcast %359 : vector<1x32xf32> to vector<64x32xf32>
    %361 = arith.mulf %358, %360 : vector<64x32xf32>
    %c0_97 = arith.constant 0 : index
    %c0_98 = arith.constant 0 : index
    %362 = vector.load %arg10[%c0_97, %c0_98] : memref<1x32xf32, #tpu.memory_space<vmem>>, vector<1x32xf32>
    %363 = vector.broadcast %362 : vector<1x32xf32> to vector<64x32xf32>
    %364 = arith.addf %361, %363 : vector<64x32xf32>
    %365 = vector.shape_cast %364 : vector<64x32xf32> to vector<8x8x32xf32>
    %c0_99 = arith.constant 0 : index
    %c0_100 = arith.constant 0 : index
    %c0_101 = arith.constant 0 : index
    %366 = vector.load %arg13[%c0_99, %c0_100, %c0_101] : memref<8x8x32xf32, #tpu.memory_space<vmem>>, vector<8x8x32xf32>
    tpu.vector_store %arg13[%c0_99, %c0_100, %c0_101], %365 {strides = array<i32>} : memref<8x8x32xf32, #tpu.memory_space<vmem>>, vector<8x8x32xf32>,
    %c0_102 = arith.constant 0 : index
    %c0_103 = arith.constant 0 : index
    %367 = vector.load %arg14[%c0_102, %c0_103] : memref<8x32xf32, #tpu.memory_space<vmem>>, vector<8x32xf32>
    tpu.vector_store %arg14[%c0_102, %c0_103], %325 {strides = array<i32>} : memref<8x32xf32, #tpu.memory_space<vmem>>, vector<8x32xf32>,
    %368 = arith.truncf %325 : vector<8x32xf32> to vector<8x32xbf16>
    %c0_104 = arith.constant 0 : index
    %c0_105 = arith.constant 0 : index
    %369 = vector.load %arg11[%c0_104, %c0_105] : memref<32x128xbf16, #tpu.memory_space<vmem>>, vector<32x128xbf16>
    %cst_106 = arith.constant dense<0.000000e+00> : vector<8x128xf32>
    %370 = tpu.matmul %368, %369, %cst_106 {dimension_numbers = #tpu.dot_dimension_numbers<[1], [0], [0], [1], [0, 0, 1, 1], [], []>} : vector<8x32xbf16>, vector<32x128xbf16>, vector<8x128xf32> -> vector<8x128xf32>
    %c0_107 = arith.constant 0 : index
    %c0_108 = arith.constant 0 : index
    %371 = vector.load %arg12[%c0_107, %c0_108] : memref<1x128xf32, #tpu.memory_space<vmem>>, vector<1x128xf32>
    %372 = vector.broadcast %371 : vector<1x128xf32> to vector<8x128xf32>
    %373 = arith.addf %370, %372 : vector<8x128xf32>
    %c0_109 = arith.constant 0 : index
    %c0_110 = arith.constant 0 : index
    %374 = vector.load %arg15[%c0_109, %c0_110] : memref<8x128xf32, #tpu.memory_space<vmem>>, vector<8x128xf32>
    tpu.vector_store %arg15[%c0_109, %c0_110], %373 {strides = array<i32>} : memref<8x128xf32, #tpu.memory_space<vmem>>, vector<8x128xf32>,
    return
  }
  func.func @transform_0(%arg0: i32) -> (i32, i32, i32) {
    %c0_i32 = arith.constant 0 : i32
    %c0_i32_0 = arith.constant 0 : i32
    %c0_i32_1 = arith.constant 0 : i32
    return %c0_i32, %arg0, %c0_i32_0 : i32, i32, i32
  }
  func.func @transform_1(%arg0: i32) -> (i32, i32) {
    %c0_i32 = arith.constant 0 : i32
    %c0_i32_0 = arith.constant 0 : i32
    return %arg0, %c0_i32 : i32, i32
  }
  func.func @transform_2(%arg0: i32) -> (i32, i32) {
    %c0_i32 = arith.constant 0 : i32
    %c0_i32_0 = arith.constant 0 : i32
    %c0_i32_1 = arith.constant 0 : i32
    return %c0_i32, %c0_i32_0 : i32, i32
  }
  func.func @transform_3(%arg0: i32) -> (i32, i32) {
    %c0_i32 = arith.constant 0 : i32
    %c0_i32_0 = arith.constant 0 : i32
    %c0_i32_1 = arith.constant 0 : i32
    return %c0_i32, %c0_i32_0 : i32, i32
  }
  func.func @transform_4(%arg0: i32) -> (i32, i32) {
    %c0_i32 = arith.constant 0 : i32
    %c0_i32_0 = arith.constant 0 : i32
    %c0_i32_1 = arith.constant 0 : i32
    return %c0_i32, %c0_i32_0 : i32, i32
  }
  func.func @transform_5(%arg0: i32) -> (i32, i32) {
    %c0_i32 = arith.constant 0 : i32
    %c0_i32_0 = arith.constant 0 : i32
    %c0_i32_1 = arith.constant 0 : i32
    return %c0_i32, %c0_i32_0 : i32, i32
  }
  func.func @transform_6(%arg0: i32) -> (i32, i32) {
    %c0_i32 = arith.constant 0 : i32
    %c0_i32_0 = arith.constant 0 : i32
    %c0_i32_1 = arith.constant 0 : i32
    return %c0_i32, %c0_i32_0 : i32, i32
  }
  func.func @transform_7(%arg0: i32) -> (i32, i32) {
    %c0_i32 = arith.constant 0 : i32
    %c0_i32_0 = arith.constant 0 : i32
    %c0_i32_1 = arith.constant 0 : i32
    return %c0_i32, %c0_i32_0 : i32, i32
  }
  func.func @transform_8(%arg0: i32) -> (i32, i32) {
    %c0_i32 = arith.constant 0 : i32
    %c0_i32_0 = arith.constant 0 : i32
    %c0_i32_1 = arith.constant 0 : i32
    return %c0_i32, %c0_i32_0 : i32, i32
  }
  func.func @transform_9(%arg0: i32) -> (i32, i32) {
    %c0_i32 = arith.constant 0 : i32
    %c0_i32_0 = arith.constant 0 : i32
    %c0_i32_1 = arith.constant 0 : i32
    return %c0_i32, %c0_i32_0 : i32, i32
  }
  func.func @transform_10(%arg0: i32) -> (i32, i32) {
    %c0_i32 = arith.constant 0 : i32
    %c0_i32_0 = arith.constant 0 : i32
    %c0_i32_1 = arith.constant 0 : i32
    return %c0_i32, %c0_i32_0 : i32, i32
  }
  func.func @transform_11(%arg0: i32) -> (i32, i32) {
    %c0_i32 = arith.constant 0 : i32
    %c0_i32_0 = arith.constant 0 : i32
    %c0_i32_1 = arith.constant 0 : i32
    return %c0_i32, %c0_i32_0 : i32, i32
  }
  func.func @transform_12(%arg0: i32) -> (i32, i32, i32) {
    %c0_i32 = arith.constant 0 : i32
    %c0_i32_0 = arith.constant 0 : i32
    %c0_i32_1 = arith.constant 0 : i32
    return %c0_i32, %arg0, %c0_i32_0 : i32, i32, i32
  }
  func.func @transform_13(%arg0: i32) -> (i32, i32) {
    %c0_i32 = arith.constant 0 : i32
    %c0_i32_0 = arith.constant 0 : i32
    return %arg0, %c0_i32 : i32, i32
  }
  func.func @transform_14(%arg0: i32) -> (i32, i32) {
    %c0_i32 = arith.constant 0 : i32
    %c0_i32_0 = arith.constant 0 : i32
    return %arg0, %c0_i32 : i32, i32
  }
}

</mosaic_0001>

<llo_original>
// kernel: lang_module_forward.1
$region0: #{lang_module_forward.1}
  #allocation0 [shape = 'u32[]', space=smem, size = 0x4, offset = 0x4, fixed_abs, tag = 'smem constant byte address 0x4 - core index']
  #allocation1 [shape = 'u32[72,128]{1,0:T(1,128)}', space=vmem, size = 0x9000, scoped, tag = 'internal scratch']
  #allocation2 [shape = 'f32[64,128]{1,0:T(8,128)}', space=vmem, size = 0x8000, scoped, tag = 'scratch operand']
  %s0 = inlined_call_operand.vmem [shape: f32[8,8,32], index: 0, kind: input, shape index: {}]
  %s1 = inlined_call_operand.vmem [shape: s32[8,1], index: 1, kind: input, shape index: {}]
  %s2 = inlined_call_operand.vmem [shape: bf16[32,128], index: 2, kind: input, shape index: {}]
  %s3 = inlined_call_operand.vmem [shape: bf16[32,128], index: 3, kind: input, shape index: {}]
  %s4 = inlined_call_operand.vmem [shape: f32[1,128], index: 4, kind: input, shape index: {}]
  %s5 = inlined_call_operand.vmem [shape: f32[1,32], index: 5, kind: input, shape index: {}]
  %s6 = inlined_call_operand.vmem [shape: bf16[32,32], index: 6, kind: input, shape index: {}]
  %s7 = inlined_call_operand.vmem [shape: f32[1,32], index: 7, kind: input, shape index: {}]
  %s8 = inlined_call_operand.vmem [shape: f32[1,32], index: 8, kind: input, shape index: {}]
  %s9 = inlined_call_operand.vmem [shape: f32[1,32], index: 9, kind: input, shape index: {}]
  %s10 = inlined_call_operand.vmem [shape: bf16[32,128], index: 10, kind: input, shape index: {}]
  %s11 = inlined_call_operand.vmem [shape: f32[1,128], index: 11, kind: input, shape index: {}]
  %s12 = inlined_call_operand.vmem [shape: f32[8,8,32], index: 12, kind: output, shape index: {0}]
  %s13 = inlined_call_operand.hbm [shape: f32[8,32], index: 13, kind: output, shape index: {1}]
  %s14 = inlined_call_operand.vmem [shape: f32[8,128], index: 14, kind: output, shape index: {2}]
  %15 = xla_tuple %s12, %s13, %s14
  %s16 = sld [smem:[#allocation0]]
  $region74: #{lang_module_forward.1} parent=0
    _
  %s18 = ssub.s32 1, %s16
  %s19 = scalar_select 0, %s18, %s16
  $region1: #{lang_module_forward.1} parent=0
    #allocation3 [shape = 'u8[4096]{0}', space=vmem, size = 0x1000, scoped, tag = 'output window, operand 1, single buffered']
    #allocation4 [shape = 's32[1]{0}', space=sflag, size = 0x4, scoped, tag = 'scoped memory for lang_module_forward.1']
    %20 = vsyncpa [#allocation4], 0
    // Predicated region
    $region2: #{lang_module_forward.1} parent=1 // pred_check
      _
    $region3: #{lang_module_forward.1} parent=1 // pred_check_branch
      %22 = sbr.rel (0) target = $region5
    $region4: #{lang_module_forward.1} parent=1 // pred_region
      _
    $region5: #{lang_module_forward.1} parent=1 // pred_fallthru
      _
    // Predicated region
    $region6: #{lang_module_forward.1} parent=1 // pred_check
      _
    $region7: #{lang_module_forward.1} parent=1 // pred_check_branch
      %24 = sbr.rel (0) target = $region9
    $region8: #{lang_module_forward.1} parent=1 // pred_region
      _
    $region9: #{lang_module_forward.1} parent=1 // pred_fallthru
      _
    // Predicated region
    $region10: #{lang_module_forward.1} parent=1 // pred_check
      _
    $region11: #{lang_module_forward.1} parent=1 // pred_check_branch
      %26 = sbr.rel (0) target = $region13
    $region12: #{lang_module_forward.1} parent=1 // pred_region
      _
    $region13: #{lang_module_forward.1} parent=1 // pred_fallthru
      _
    // Predicated region
    $region14: #{lang_module_forward.1} parent=1 // pred_check
      _
    $region15: #{lang_module_forward.1} parent=1 // pred_check_branch
      %28 = sbr.rel (0) target = $region17
    $region16: #{lang_module_forward.1} parent=1 // pred_region
      _
    $region17: #{lang_module_forward.1} parent=1 // pred_fallthru
      _
    // Predicated region
    $region18: #{lang_module_forward.1} parent=1 // pred_check
      _
    $region19: #{lang_module_forward.1} parent=1 // pred_check_branch
      %30 = sbr.rel (0) target = $region21
    $region20: #{lang_module_forward.1} parent=1 // pred_region
      _
    $region21: #{lang_module_forward.1} parent=1 // pred_fallthru
      _
    // Predicated region
    $region22: #{lang_module_forward.1} parent=1 // pred_check
      _
    $region23: #{lang_module_forward.1} parent=1 // pred_check_branch
      %32 = sbr.rel (0) target = $region25
    $region24: #{lang_module_forward.1} parent=1 // pred_region
      _
    $region25: #{lang_module_forward.1} parent=1 // pred_fallthru
      _
    // Predicated region
    $region26: #{lang_module_forward.1} parent=1 // pred_check
      _
    $region27: #{lang_module_forward.1} parent=1 // pred_check_branch
      %34 = sbr.rel (0) target = $region29
    $region28: #{lang_module_forward.1} parent=1 // pred_region
      _
    $region29: #{lang_module_forward.1} parent=1 // pred_fallthru
      _
    // Predicated region
    $region30: #{lang_module_forward.1} parent=1 // pred_check
      _
    $region31: #{lang_module_forward.1} parent=1 // pred_check_branch
      %36 = sbr.rel (0) target = $region33
    $region32: #{lang_module_forward.1} parent=1 // pred_region
      _
    $region33: #{lang_module_forward.1} parent=1 // pred_fallthru
      _
    // Predicated region
    $region34: #{lang_module_forward.1} parent=1 // pred_check
      _
    $region35: #{lang_module_forward.1} parent=1 // pred_check_branch
      %38 = sbr.rel (0) target = $region37
    $region36: #{lang_module_forward.1} parent=1 // pred_region
      _
    $region37: #{lang_module_forward.1} parent=1 // pred_fallthru
      _
    // Predicated region
    $region38: #{lang_module_forward.1} parent=1 // pred_check
      _
    $region39: #{lang_module_forward.1} parent=1 // pred_check_branch
      %40 = sbr.rel (0) target = $region41
    $region40: #{lang_module_forward.1} parent=1 // pred_region
      _
    $region41: #{lang_module_forward.1} parent=1 // pred_fallthru
      _
    // Predicated region
    $region42: #{lang_module_forward.1} parent=1 // pred_check
      _
    $region43: #{lang_module_forward.1} parent=1 // pred_check_branch
      %42 = sbr.rel (0) target = $region45
    $region44: #{lang_module_forward.1} parent=1 // pred_region
      _
    $region45: #{lang_module_forward.1} parent=1 // pred_fallthru
      _
    // Predicated region
    $region46: #{lang_module_forward.1} parent=1 // pred_check
      _
    $region47: #{lang_module_forward.1} parent=1 // pred_check_branch
      %44 = sbr.rel (0) target = $region49
    $region48: #{lang_module_forward.1} parent=1 // pred_region
      _
    $region49: #{lang_module_forward.1} parent=1 // pred_fallthru
      _
    %v46 = vld [vmem:[%s0] sm:$0xff]
    %v47 = vld [vmem:[%s0 + $0x8] sm:$0xff]
    %v48 = vld [vmem:[%s0 + $0x10] sm:$0xff]
    %v49 = vld [vmem:[%s0 + $0x18] sm:$0xff]
    %v50 = vld [vmem:[%s0 + $0x20] sm:$0xff]
    %v51 = vld [vmem:[%s0 + $0x28] sm:$0xff]
    %v52 = vld [vmem:[%s0 + $0x30] sm:$0xff]
    %v53 = vld [vmem:[%s0 + $0x38] sm:$0xff]
    %v54 = vpack.c.bf16 %v47, %v46
    %v55 = vpack.c.bf16 %v49, %v48
    %v56 = vpack.c.bf16 %v51, %v50
    %v57 = vpack.c.bf16 %v53, %v52
    %v58 = vld [vmem:[%s2] sm:$0xf]
    %v59 = vld [vmem:[%s2 + $0x4] sm:$0xf]
    %v60 = vld [vmem:[%s2 + $0x8] sm:$0xf]
    %v61 = vld [vmem:[%s2 + $0xc] sm:$0xf]
    %v62 = vld [vmem:[%s4] sm:$0x1]
    %v64 = vperm.slane %v62, 0
    %v70 = vunpack.c.l.b16 %v58
    %v71 = vunpack.c.l.b16 %v59
    %v72 = vunpack.c.l.b16 %v60
    %v73 = vunpack.c.l.b16 %v61
    %v74 = vpack.c.b16 %v71, %v70
    %v75 = vpack.c.b16 %v73, %v72
    %vm78 = vcmask 261120
    %v80 = vsel %vm78, %v54, 0
    %v83 = vsel %vm78, %v55, 0
    %v86 = vsel %vm78, %v56, 0
    %v89 = vsel %vm78, %v57, 0
    %91 = vmatpush.bf16.msra.mxu0 0
    %92 = vmatpush.bf16.msra.mxu0 0
    %93 = vmatpush.bf16.msra.mxu0 0
    %94 = vmatpush.bf16.msra.mxu0 0
    %95 = vmatpush.bf16.msra.mxu0 0
    %96 = vmatpush.bf16.msra.mxu0 0
    %97 = vmatpush.bf16.msra.mxu0 %v75
    %98 = vmatpush.bf16.msra.mxu0 %v74
    %99 = vmatmul.bf16.gmra.mxu0 %v80
    %v100 = vpop.f32.mrf.mxu0
    %v101 = vadd.f32 %v64, %v100
    %v102 = vpop.f32.mrf.mxu0
    %v103 = vadd.f32 %v64, %v102
    %104 = vmatmul.bf16.gmra.mxu0 %v83
    %v105 = vpop.f32.mrf.mxu0
    %v106 = vadd.f32 %v64, %v105
    %v107 = vpop.f32.mrf.mxu0
    %v108 = vadd.f32 %v64, %v107
    %109 = vmatmul.bf16.gmra.mxu0 %v86
    %v110 = vpop.f32.mrf.mxu0
    %v111 = vadd.f32 %v64, %v110
    %v112 = vpop.f32.mrf.mxu0
    %v113 = vadd.f32 %v64, %v112
    %114 = vmatmul.bf16.gmra.mxu0 %v89
    %v115 = vpop.f32.mrf.mxu0
    %v116 = vadd.f32 %v64, %v115
    %v117 = vpop.f32.mrf.mxu0
    %v118 = vadd.f32 %v64, %v117
    %119 = vdwg.mxu0
    %120 = vst [vmem:[#allocation2] sm:$0xff] %v101
    %121 = vst [vmem:[#allocation2 + $0x8] sm:$0xff] %v103
    %122 = vst [vmem:[#allocation2 + $0x10] sm:$0xff] %v106
    %123 = vst [vmem:[#allocation2 + $0x18] sm:$0xff] %v108
    %124 = vst [vmem:[#allocation2 + $0x20] sm:$0xff] %v111
    %125 = vst [vmem:[#allocation2 + $0x28] sm:$0xff] %v113
    %126 = vst [vmem:[#allocation2 + $0x30] sm:$0xff] %v116
    %127 = vst [vmem:[#allocation2 + $0x38] sm:$0xff] %v118
    %v128 = vld [vmem:[%s1] sm:$0xff]
    %v129 = vld [vmem:[%s5] sm:$0x1]
    %v130 = vld [vmem:[%s3] sm:$0xf]
    %v131 = vld [vmem:[%s3 + $0x4] sm:$0xf]
    %v132 = vld [vmem:[%s3 + $0x8] sm:$0xf]
    %v133 = vld [vmem:[%s3 + $0xc] sm:$0xf]
    %vm134 = vcmp.gt.s32.totalorder %v128, 0
    %vm135 = vcmp.gt.s32.totalorder %v128, 1
    %vm136 = vcmp.gt.s32.totalorder %v128, 2
    %vm137 = vcmp.gt.s32.totalorder %v128, 3
    %vm138 = vcmp.gt.s32.totalorder %v128, 4
    %vm139 = vcmp.gt.s32.totalorder %v128, 5
    %vm140 = vcmp.gt.s32.totalorder %v128, 6
    %vm141 = vcmp.gt.s32.totalorder %v128, 7
    %v142 = vld [vmem:[#allocation2] sm:$0xff]
    %v147 = vunpack.c.l.b16 %v130
    %v148 = vunpack.c.l.b16 %v131
    %v149 = vunpack.c.l.b16 %v132
    %v150 = vunpack.c.l.b16 %v133
    %v151 = vpack.c.b16 %v148, %v147
    %v152 = vpack.c.b16 %v150, %v149
    %v156 = vsel %vm78, 0, 0
    %158 = vmatpush.bf16.msra.mxu0 0
    %159 = vmatpush.bf16.msra.mxu0 0
    %160 = vmatpush.bf16.msra.mxu0 0
    %161 = vmatpush.bf16.msra.mxu0 0
    %162 = vmatpush.bf16.msra.mxu0 0
    %163 = vmatpush.bf16.msra.mxu0 0
    %164 = vmatpush.bf16.msra.mxu0 %v152
    %165 = vmatpush.bf16.msra.mxu0 %v151
    %166 = vmatmul.bf16.gmra.mxu0 %v156
    %v167 = vpop.f32.mrf.mxu0
    %v168 = vadd.f32 0.0, %v167
    %v169 = vpop.f32.mrf.mxu0
    %170 = vdwg.mxu0
    %v171 = vadd.f32 %v142, %v168
    %v172 = vxor.u32 %v171, 2147483648
    %v173 = vmul.f32 %v172, 1.442695
    %v174 = vpow.pop %v173
    %v175 = vadd.f32 %v174, 1.0
    %v176 = vrcp.pop %v175
    %v177 = vmul.f32 %v175, %v176
    %v178 = vsub.f32 1.0, %v177
    %v179 = vmul.f32 %v176, %v178
    %v180 = vadd.f32 %v176, %v179
    %vm181 = vweird.f32 %v175
    %vm182 = vweird.f32 %v176
    %vm183 = vmor %vm181, %vm182
    %v184 = vsel %vm183, %v176, %v180
    %v185 = vand.u32 2147483647, %v175
    %vm186 = vcmp.eq.f32.partialorder %v185, 8.507059e+37
    %v187 = vand.u32 %v175, 2147483648
    %v188 = vor.u32 1.1754944e-38, %v187
    %v189 = vsel %vm186, %v188, %v184
    %v190 = vmul.f32 1.0, %v189
    %v192 = vperm.slane %v129, 0
    %193 = vrot.lane.b32.xlu0 %v192, 64
    %v194 = vpop.permute.xlu0 %193
    %v196 = vadd.f32 %v168, %v194
    %198 = vrot.lane.b32.xlu0 %v196, 64
    %v199 = vpop.permute.xlu0 %198
    %v201 = vmul.f32 %v190, %v199
    %203 = vrot.lane.b32.xlu0 %v201, 64
    %v204 = vpop.permute.xlu0 %203
    %v206 = vadd.f32 %v142, %v204
    %v207 = vtanh.pop %v206
    %v208 = vsub.f32 1.0, %v190
    %210 = vrot.lane.b32.xlu0 %v207, 96
    %v211 = vpop.permute.xlu0 %210
    %v213 = vmul.f32 %v208, %v211
    %v214 = vmul.f32 %v190, 0.0
    %v215 = vadd.f32 %v213, %v214
    %v216 = vsel %vm134, 1, 0
    %217 = vset.pattern.permute.xlu0 0
    %218 = vperm.xlu0 %217, %v216
    %v219 = vpop.permute.xlu0 %218
    %vm220 = vcmp.eq.s32.totalorder %v219, 1
    %v221 = vsel %vm220, %v215, 0.0
    %223 = vrot.lane.b32.xlu0 %v221, 96
    %v224 = vpop.permute.xlu0 %223
    %226 = vst.msk [vmem:[%s12] sm:$0xff] %vm78, %v224
    %v227 = vld [vmem:[#allocation2 + $0x8] sm:$0xff]
    %v228 = vpack.c.bf16 %v221, %v221
    %230 = vrot.lane.b32.xlu0 %v228, 96
    %v231 = vpop.permute.xlu0 %230
    %v233 = vsel %vm78, %v231, 0
    %235 = vmatpush.bf16.msra.mxu0 0
    %236 = vmatpush.bf16.msra.mxu0 0
    %237 = vmatpush.bf16.msra.mxu0 0
    %238 = vmatpush.bf16.msra.mxu0 0
    %239 = vmatpush.bf16.msra.mxu0 0
    %240 = vmatpush.bf16.msra.mxu0 0
    %241 = vmatpush.bf16.msra.mxu0 %v152
    %242 = vmatpush.bf16.msra.mxu0 %v151
    %243 = vmatmul.bf16.gmra.mxu0 %v233
    %v244 = vpop.f32.mrf.mxu0
    %v245 = vadd.f32 0.0, %v244
    %v246 = vpop.f32.mrf.mxu0
    %247 = vdwg.mxu0
    %v248 = vadd.f32 %v227, %v245
    %v249 = vxor.u32 %v248, 2147483648
    %v250 = vmul.f32 %v249, 1.442695
    %v251 = vpow.pop %v250
    %v252 = vadd.f32 %v251, 1.0
    %v253 = vrcp.pop %v252
    %v254 = vmul.f32 %v252, %v253
    %v255 = vsub.f32 1.0, %v254
    %v256 = vmul.f32 %v253, %v255
    %v257 = vadd.f32 %v253, %v256
    %vm258 = vweird.f32 %v252
    %vm259 = vweird.f32 %v253
    %vm260 = vmor %vm258, %vm259
    %v261 = vsel %vm260, %v253, %v257
    %v262 = vand.u32 2147483647, %v252
    %vm263 = vcmp.eq.f32.partialorder %v262, 8.507059e+37
    %v264 = vand.u32 %v252, 2147483648
    %v265 = vor.u32 1.1754944e-38, %v264
    %v266 = vsel %vm263, %v265, %v261
    %v267 = vmul.f32 1.0, %v266
    %v268 = vadd.f32 %v245, %v194
    %270 = vrot.lane.b32.xlu0 %v268, 64
    %v271 = vpop.permute.xlu0 %270
    %v273 = vmul.f32 %v267, %v271
    %275 = vrot.lane.b32.xlu0 %v273, 64
    %v276 = vpop.permute.xlu0 %275
    %v278 = vadd.f32 %v227, %v276
    %v279 = vtanh.pop %v278
    %v280 = vsub.f32 1.0, %v267
    %282 = vrot.lane.b32.xlu0 %v279, 96
    %v283 = vpop.permute.xlu0 %282
    %v285 = vmul.f32 %v280, %v283
    %v286 = vmul.f32 %v267, %v221
    %v287 = vadd.f32 %v285, %v286
    %v288 = vsel %vm135, 1, 0
    %289 = vset.pattern.permute.xlu0 0
    %290 = vperm.xlu0 %289, %v288
    %v291 = vpop.permute.xlu0 %290
    %vm292 = vcmp.eq.s32.totalorder %v291, 1
    %v293 = vsel %vm292, %v287, %v221
    %v294 = vsel %vm292, %v287, 0.0
    %296 = vrot.lane.b32.xlu0 %v294, 96
    %v297 = vpop.permute.xlu0 %296
    %s299 = scalar_lea.vmem %s12, 8
    %300 = vst.msk [vmem:[%s299] sm:$0xff] %vm78, %v297
    %v301 = vld [vmem:[#allocation2 + $0x10] sm:$0xff]
    %v302 = vpack.c.bf16 %v293, %v293
    %304 = vrot.lane.b32.xlu0 %v302, 96
    %v305 = vpop.permute.xlu0 %304
    %v307 = vsel %vm78, %v305, 0
    %309 = vmatpush.bf16.msra.mxu0 0
    %310 = vmatpush.bf16.msra.mxu0 0
    %311 = vmatpush.bf16.msra.mxu0 0
    %312 = vmatpush.bf16.msra.mxu0 0
    %313 = vmatpush.bf16.msra.mxu0 0
    %314 = vmatpush.bf16.msra.mxu0 0
    %315 = vmatpush.bf16.msra.mxu0 %v152
    %316 = vmatpush.bf16.msra.mxu0 %v151
    %317 = vmatmul.bf16.gmra.mxu0 %v307
    %v318 = vpop.f32.mrf.mxu0
    %v319 = vadd.f32 0.0, %v318
    %v320 = vpop.f32.mrf.mxu0
    %321 = vdwg.mxu0
    %v322 = vadd.f32 %v301, %v319
    %v323 = vxor.u32 %v322, 2147483648
    %v324 = vmul.f32 %v323, 1.442695
    %v325 = vpow.pop %v324
    %v326 = vadd.f32 %v325, 1.0
    %v327 = vrcp.pop %v326
    %v328 = vmul.f32 %v326, %v327
    %v329 = vsub.f32 1.0, %v328
    %v330 = vmul.f32 %v327, %v329
    %v331 = vadd.f32 %v327, %v330
    %vm332 = vweird.f32 %v326
    %vm333 = vweird.f32 %v327
    %vm334 = vmor %vm332, %vm333
    %v335 = vsel %vm334, %v327, %v331
    %v336 = vand.u32 2147483647, %v326
    %vm337 = vcmp.eq.f32.partialorder %v336, 8.507059e+37
    %v338 = vand.u32 %v326, 2147483648
    %v339 = vor.u32 1.1754944e-38, %v338
    %v340 = vsel %vm337, %v339, %v335
    %v341 = vmul.f32 1.0, %v340
    %v342 = vadd.f32 %v319, %v194
    %344 = vrot.lane.b32.xlu0 %v342, 64
    %v345 = vpop.permute.xlu0 %344
    %v347 = vmul.f32 %v341, %v345
    %349 = vrot.lane.b32.xlu0 %v347, 64
    %v350 = vpop.permute.xlu0 %349
    %v352 = vadd.f32 %v301, %v350
    %v353 = vtanh.pop %v352
    %v354 = vsub.f32 1.0, %v341
    %356 = vrot.lane.b32.xlu0 %v353, 96
    %v357 = vpop.permute.xlu0 %356
    %v359 = vmul.f32 %v354, %v357
    %v360 = vmul.f32 %v341, %v293
    %v361 = vadd.f32 %v359, %v360
    %v362 = vsel %vm136, 1, 0
    %363 = vset.pattern.permute.xlu0 0
    %364 = vperm.xlu0 %363, %v362
    %v365 = vpop.permute.xlu0 %364
    %vm366 = vcmp.eq.s32.totalorder %v365, 1
    %v367 = vsel %vm366, %v361, %v293
    %v368 = vsel %vm366, %v361, 0.0
    %370 = vrot.lane.b32.xlu0 %v368, 96
    %v371 = vpop.permute.xlu0 %370
    %s373 = scalar_lea.vmem %s12, 16
    %374 = vst.msk [vmem:[%s373] sm:$0xff] %vm78, %v371
    %v375 = vld [vmem:[#allocation2 + $0x18] sm:$0xff]
    %v376 = vpack.c.bf16 %v367, %v367
    %378 = vrot.lane.b32.xlu0 %v376, 96
    %v379 = vpop.permute.xlu0 %378
    %v381 = vsel %vm78, %v379, 0
    %383 = vmatpush.bf16.msra.mxu0 0
    %384 = vmatpush.bf16.msra.mxu0 0
    %385 = vmatpush.bf16.msra.mxu0 0
    %386 = vmatpush.bf16.msra.mxu0 0
    %387 = vmatpush.bf16.msra.mxu0 0
    %388 = vmatpush.bf16.msra.mxu0 0
    %389 = vmatpush.bf16.msra.mxu0 %v152
    %390 = vmatpush.bf16.msra.mxu0 %v151
    %391 = vmatmul.bf16.gmra.mxu0 %v381
    %v392 = vpop.f32.mrf.mxu0
    %v393 = vadd.f32 0.0, %v392
    %v394 = vpop.f32.mrf.mxu0
    %395 = vdwg.mxu0
    %v396 = vadd.f32 %v375, %v393
    %v397 = vxor.u32 %v396, 2147483648
    %v398 = vmul.f32 %v397, 1.442695
    %v399 = vpow.pop %v398
    %v400 = vadd.f32 %v399, 1.0
    %v401 = vrcp.pop %v400
    %v402 = vmul.f32 %v400, %v401
    %v403 = vsub.f32 1.0, %v402
    %v404 = vmul.f32 %v401, %v403
    %v405 = vadd.f32 %v401, %v404
    %vm406 = vweird.f32 %v400
    %vm407 = vweird.f32 %v401
    %vm408 = vmor %vm406, %vm407
    %v409 = vsel %vm408, %v401, %v405
    %v410 = vand.u32 2147483647, %v400
    %vm411 = vcmp.eq.f32.partialorder %v410, 8.507059e+37
    %v412 = vand.u32 %v400, 2147483648
    %v413 = vor.u32 1.1754944e-38, %v412
    %v414 = vsel %vm411, %v413, %v409
    %v415 = vmul.f32 1.0, %v414
    %v416 = vadd.f32 %v393, %v194
    %418 = vrot.lane.b32.xlu0 %v416, 64
    %v419 = vpop.permute.xlu0 %418
    %v421 = vmul.f32 %v415, %v419
    %423 = vrot.lane.b32.xlu0 %v421, 64
    %v424 = vpop.permute.xlu0 %423
    %v426 = vadd.f32 %v375, %v424
    %v427 = vtanh.pop %v426
    %v428 = vsub.f32 1.0, %v415
    %430 = vrot.lane.b32.xlu0 %v427, 96
    %v431 = vpop.permute.xlu0 %430
    %v433 = vmul.f32 %v428, %v431
    %v434 = vmul.f32 %v415, %v367
    %v435 = vadd.f32 %v433, %v434
    %v436 = vsel %vm137, 1, 0
    %437 = vset.pattern.permute.xlu0 0
    %438 = vperm.xlu0 %437, %v436
    %v439 = vpop.permute.xlu0 %438
    %vm440 = vcmp.eq.s32.totalorder %v439, 1
    %v441 = vsel %vm440, %v435, %v367
    %v442 = vsel %vm440, %v435, 0.0
    %444 = vrot.lane.b32.xlu0 %v442, 96
    %v445 = vpop.permute.xlu0 %444
    %s447 = scalar_lea.vmem %s12, 24
    %448 = vst.msk [vmem:[%s447] sm:$0xff] %vm78, %v445
    %v449 = vld [vmem:[#allocation2 + $0x20] sm:$0xff]
    %v450 = vpack.c.bf16 %v441, %v441
    %452 = vrot.lane.b32.xlu0 %v450, 96
    %v453 = vpop.permute.xlu0 %452
    %v455 = vsel %vm78, %v453, 0
    %457 = vmatpush.bf16.msra.mxu0 0
    %458 = vmatpush.bf16.msra.mxu0 0
    %459 = vmatpush.bf16.msra.mxu0 0
    %460 = vmatpush.bf16.msra.mxu0 0
    %461 = vmatpush.bf16.msra.mxu0 0
    %462 = vmatpush.bf16.msra.mxu0 0
    %463 = vmatpush.bf16.msra.mxu0 %v152
    %464 = vmatpush.bf16.msra.mxu0 %v151
    %465 = vmatmul.bf16.gmra.mxu0 %v455
    %v466 = vpop.f32.mrf.mxu0
    %v467 = vadd.f32 0.0, %v466
    %v468 = vpop.f32.mrf.mxu0
    %469 = vdwg.mxu0
    %v470 = vadd.f32 %v449, %v467
    %v471 = vxor.u32 %v470, 2147483648
    %v472 = vmul.f32 %v471, 1.442695
    %v473 = vpow.pop %v472
    %v474 = vadd.f32 %v473, 1.0
    %v475 = vrcp.pop %v474
    %v476 = vmul.f32 %v474, %v475
    %v477 = vsub.f32 1.0, %v476
    %v478 = vmul.f32 %v475, %v477
    %v479 = vadd.f32 %v475, %v478
    %vm480 = vweird.f32 %v474
    %vm481 = vweird.f32 %v475
    %vm482 = vmor %vm480, %vm481
    %v483 = vsel %vm482, %v475, %v479
    %v484 = vand.u32 2147483647, %v474
    %vm485 = vcmp.eq.f32.partialorder %v484, 8.507059e+37
    %v486 = vand.u32 %v474, 2147483648
    %v487 = vor.u32 1.1754944e-38, %v486
    %v488 = vsel %vm485, %v487, %v483
    %v489 = vmul.f32 1.0, %v488
    %v490 = vadd.f32 %v467, %v194
    %492 = vrot.lane.b32.xlu0 %v490, 64
    %v493 = vpop.permute.xlu0 %492
    %v495 = vmul.f32 %v489, %v493
    %497 = vrot.lane.b32.xlu0 %v495, 64
    %v498 = vpop.permute.xlu0 %497
    %v500 = vadd.f32 %v449, %v498
    %v501 = vtanh.pop %v500
    %v502 = vsub.f32 1.0, %v489
    %504 = vrot.lane.b32.xlu0 %v501, 96
    %v505 = vpop.permute.xlu0 %504
    %v507 = vmul.f32 %v502, %v505
    %v508 = vmul.f32 %v489, %v441
    %v509 = vadd.f32 %v507, %v508
    %v510 = vsel %vm138, 1, 0
    %511 = vset.pattern.permute.xlu0 0
    %512 = vperm.xlu0 %511, %v510
    %v513 = vpop.permute.xlu0 %512
    %vm514 = vcmp.eq.s32.totalorder %v513, 1
    %v515 = vsel %vm514, %v509, %v441
    %v516 = vsel %vm514, %v509, 0.0
    %518 = vrot.lane.b32.xlu0 %v516, 96
    %v519 = vpop.permute.xlu0 %518
    %s521 = scalar_lea.vmem %s12, 32
    %522 = vst.msk [vmem:[%s521] sm:$0xff] %vm78, %v519
    %v523 = vld [vmem:[#allocation2 + $0x28] sm:$0xff]
    %v524 = vpack.c.bf16 %v515, %v515
    %526 = vrot.lane.b32.xlu0 %v524, 96
    %v527 = vpop.permute.xlu0 %526
    %v529 = vsel %vm78, %v527, 0
    %531 = vmatpush.bf16.msra.mxu0 0
    %532 = vmatpush.bf16.msra.mxu0 0
    %533 = vmatpush.bf16.msra.mxu0 0
    %534 = vmatpush.bf16.msra.mxu0 0
    %535 = vmatpush.bf16.msra.mxu0 0
    %536 = vmatpush.bf16.msra.mxu0 0
    %537 = vmatpush.bf16.msra.mxu0 %v152
    %538 = vmatpush.bf16.msra.mxu0 %v151
    %539 = vmatmul.bf16.gmra.mxu0 %v529
    %v540 = vpop.f32.mrf.mxu0
    %v541 = vadd.f32 0.0, %v540
    %v542 = vpop.f32.mrf.mxu0
    %543 = vdwg.mxu0
    %v544 = vadd.f32 %v523, %v541
    %v545 = vxor.u32 %v544, 2147483648
    %v546 = vmul.f32 %v545, 1.442695
    %v547 = vpow.pop %v546
    %v548 = vadd.f32 %v547, 1.0
    %v549 = vrcp.pop %v548
    %v550 = vmul.f32 %v548, %v549
    %v551 = vsub.f32 1.0, %v550
    %v552 = vmul.f32 %v549, %v551
    %v553 = vadd.f32 %v549, %v552
    %vm554 = vweird.f32 %v548
    %vm555 = vweird.f32 %v549
    %vm556 = vmor %vm554, %vm555
    %v557 = vsel %vm556, %v549, %v553
    %v558 = vand.u32 2147483647, %v548
    %vm559 = vcmp.eq.f32.partialorder %v558, 8.507059e+37
    %v560 = vand.u32 %v548, 2147483648
    %v561 = vor.u32 1.1754944e-38, %v560
    %v562 = vsel %vm559, %v561, %v557
    %v563 = vmul.f32 1.0, %v562
    %v564 = vadd.f32 %v541, %v194
    %566 = vrot.lane.b32.xlu0 %v564, 64
    %v567 = vpop.permute.xlu0 %566
    %v569 = vmul.f32 %v563, %v567
    %571 = vrot.lane.b32.xlu0 %v569, 64
    %v572 = vpop.permute.xlu0 %571
    %v574 = vadd.f32 %v523, %v572
    %v575 = vtanh.pop %v574
    %v576 = vsub.f32 1.0, %v563
    %578 = vrot.lane.b32.xlu0 %v575, 96
    %v579 = vpop.permute.xlu0 %578
    %v581 = vmul.f32 %v576, %v579
    %v582 = vmul.f32 %v563, %v515
    %v583 = vadd.f32 %v581, %v582
    %v584 = vsel %vm139, 1, 0
    %585 = vset.pattern.permute.xlu0 0
    %586 = vperm.xlu0 %585, %v584
    %v587 = vpop.permute.xlu0 %586
    %vm588 = vcmp.eq.s32.totalorder %v587, 1
    %v589 = vsel %vm588, %v583, %v515
    %v590 = vsel %vm588, %v583, 0.0
    %592 = vrot.lane.b32.xlu0 %v590, 96
    %v593 = vpop.permute.xlu0 %592
    %s595 = scalar_lea.vmem %s12, 40
    %596 = vst.msk [vmem:[%s595] sm:$0xff] %vm78, %v593
    %v597 = vld [vmem:[#allocation2 + $0x30] sm:$0xff]
    %v598 = vpack.c.bf16 %v589, %v589
    %600 = vrot.lane.b32.xlu0 %v598, 96
    %v601 = vpop.permute.xlu0 %600
    %v603 = vsel %vm78, %v601, 0
    %605 = vmatpush.bf16.msra.mxu0 0
    %606 = vmatpush.bf16.msra.mxu0 0
    %607 = vmatpush.bf16.msra.mxu0 0
    %608 = vmatpush.bf16.msra.mxu0 0
    %609 = vmatpush.bf16.msra.mxu0 0
    %610 = vmatpush.bf16.msra.mxu0 0
    %611 = vmatpush.bf16.msra.mxu0 %v152
    %612 = vmatpush.bf16.msra.mxu0 %v151
    %613 = vmatmul.bf16.gmra.mxu0 %v603
    %v614 = vpop.f32.mrf.mxu0
    %v615 = vadd.f32 0.0, %v614
    %v616 = vpop.f32.mrf.mxu0
    %617 = vdwg.mxu0
    %v618 = vadd.f32 %v597, %v615
    %v619 = vxor.u32 %v618, 2147483648
    %v620 = vmul.f32 %v619, 1.442695
    %v621 = vpow.pop %v620
    %v622 = vadd.f32 %v621, 1.0
    %v623 = vrcp.pop %v622
    %v624 = vmul.f32 %v622, %v623
    %v625 = vsub.f32 1.0, %v624
    %v626 = vmul.f32 %v623, %v625
    %v627 = vadd.f32 %v623, %v626
    %vm628 = vweird.f32 %v622
    %vm629 = vweird.f32 %v623
    %vm630 = vmor %vm628, %vm629
    %v631 = vsel %vm630, %v623, %v627
    %v632 = vand.u32 2147483647, %v622
    %vm633 = vcmp.eq.f32.partialorder %v632, 8.507059e+37
    %v634 = vand.u32 %v622, 2147483648
    %v635 = vor.u32 1.1754944e-38, %v634
    %v636 = vsel %vm633, %v635, %v631
    %v637 = vmul.f32 1.0, %v636
    %v638 = vadd.f32 %v615, %v194
    %640 = vrot.lane.b32.xlu0 %v638, 64
    %v641 = vpop.permute.xlu0 %640
    %v643 = vmul.f32 %v637, %v641
    %645 = vrot.lane.b32.xlu0 %v643, 64
    %v646 = vpop.permute.xlu0 %645
    %v648 = vadd.f32 %v597, %v646
    %v649 = vtanh.pop %v648
    %v650 = vsub.f32 1.0, %v637
    %652 = vrot.lane.b32.xlu0 %v649, 96
    %v653 = vpop.permute.xlu0 %652
    %v655 = vmul.f32 %v650, %v653
    %v656 = vmul.f32 %v637, %v589
    %v657 = vadd.f32 %v655, %v656
    %v658 = vsel %vm140, 1, 0
    %659 = vset.pattern.permute.xlu0 0
    %660 = vperm.xlu0 %659, %v658
    %v661 = vpop.permute.xlu0 %660
    %vm662 = vcmp.eq.s32.totalorder %v661, 1
    %v663 = vsel %vm662, %v657, %v589
    %v664 = vsel %vm662, %v657, 0.0
    %666 = vrot.lane.b32.xlu0 %v664, 96
    %v667 = vpop.permute.xlu0 %666
    %s669 = scalar_lea.vmem %s12, 48
    %670 = vst.msk [vmem:[%s669] sm:$0xff] %vm78, %v667
    %v671 = vld [vmem:[#allocation2 + $0x38] sm:$0xff]
    %v672 = vpack.c.bf16 %v663, %v663
    %674 = vrot.lane.b32.xlu0 %v672, 96
    %v675 = vpop.permute.xlu0 %674
    %v677 = vsel %vm78, %v675, 0
    %679 = vmatpush.bf16.msra.mxu0 0
    %680 = vmatpush.bf16.msra.mxu0 0
    %681 = vmatpush.bf16.msra.mxu0 0
    %682 = vmatpush.bf16.msra.mxu0 0
    %683 = vmatpush.bf16.msra.mxu0 0
    %684 = vmatpush.bf16.msra.mxu0 0
    %685 = vmatpush.bf16.msra.mxu0 %v152
    %686 = vmatpush.bf16.msra.mxu0 %v151
    %687 = vmatmul.bf16.gmra.mxu0 %v677
    %v688 = vpop.f32.mrf.mxu0
    %v689 = vadd.f32 0.0, %v688
    %v690 = vpop.f32.mrf.mxu0
    %691 = vdwg.mxu0
    %v692 = vadd.f32 %v671, %v689
    %v693 = vxor.u32 %v692, 2147483648
    %v694 = vmul.f32 %v693, 1.442695
    %v695 = vpow.pop %v694
    %v696 = vadd.f32 %v695, 1.0
    %v697 = vrcp.pop %v696
    %v698 = vmul.f32 %v696, %v697
    %v699 = vsub.f32 1.0, %v698
    %v700 = vmul.f32 %v697, %v699
    %v701 = vadd.f32 %v697, %v700
    %vm702 = vweird.f32 %v696
    %vm703 = vweird.f32 %v697
    %vm704 = vmor %vm702, %vm703
    %v705 = vsel %vm704, %v697, %v701
    %v706 = vand.u32 2147483647, %v696
    %vm707 = vcmp.eq.f32.partialorder %v706, 8.507059e+37
    %v708 = vand.u32 %v696, 2147483648
    %v709 = vor.u32 1.1754944e-38, %v708
    %v710 = vsel %vm707, %v709, %v705
    %v711 = vmul.f32 1.0, %v710
    %v712 = vadd.f32 %v689, %v194
    %714 = vrot.lane.b32.xlu0 %v712, 64
    %v715 = vpop.permute.xlu0 %714
    %v717 = vmul.f32 %v711, %v715
    %719 = vrot.lane.b32.xlu0 %v717, 64
    %v720 = vpop.permute.xlu0 %719
    %v722 = vadd.f32 %v671, %v720
    %v723 = vtanh.pop %v722
    %v724 = vsub.f32 1.0, %v711
    %726 = vrot.lane.b32.xlu0 %v723, 96
    %v727 = vpop.permute.xlu0 %726
    %v729 = vmul.f32 %v724, %v727
    %v730 = vmul.f32 %v711, %v663
    %v731 = vadd.f32 %v729, %v730
    %v732 = vsel %vm141, 1, 0
    %733 = vset.pattern.permute.xlu0 0
    %734 = vperm.xlu0 %733, %v732
    %v735 = vpop.permute.xlu0 %734
    %vm736 = vcmp.eq.s32.totalorder %v735, 1
    %v737 = vsel %vm736, %v731, %v663
    %v738 = vsel %vm736, %v731, 0.0
    %740 = vrot.lane.b32.xlu0 %v738, 96
    %v741 = vpop.permute.xlu0 %740
    %s743 = scalar_lea.vmem %s12, 56
    %744 = vst.msk [vmem:[%s743] sm:$0xff] %vm78, %v741
    %v745 = vld [vmem:[%s12] sm:$0xff]
    %v746 = vld [vmem:[%s12 + $0x8] sm:$0xff]
    %v747 = vld [vmem:[%s12 + $0x10] sm:$0xff]
    %v748 = vld [vmem:[%s12 + $0x18] sm:$0xff]
    %v749 = vld [vmem:[%s12 + $0x20] sm:$0xff]
    %v750 = vld [vmem:[%s12 + $0x28] sm:$0xff]
    %v751 = vld [vmem:[%s12 + $0x30] sm:$0xff]
    %v752 = vld [vmem:[%s12 + $0x38] sm:$0xff]
    %v753 = vpack.c.bf16 %v746, %v745
    %v754 = vpack.c.bf16 %v748, %v747
    %v755 = vpack.c.bf16 %v750, %v749
    %v756 = vpack.c.bf16 %v752, %v751
    %v757 = vld [vmem:[%s6] sm:$0xf]
    %v758 = vld [vmem:[%s6 + $0x4] sm:$0xf]
    %v759 = vld [vmem:[%s6 + $0x8] sm:$0xf]
    %v760 = vld [vmem:[%s6 + $0xc] sm:$0xf]
    %v761 = vld [vmem:[%s7] sm:$0x1]
    %v763 = vperm.slane %v761, 0
    %v769 = vunpack.c.l.b16 %v757
    %v770 = vunpack.c.l.b16 %v758
    %v771 = vunpack.c.l.b16 %v759
    %v772 = vunpack.c.l.b16 %v760
    %v773 = vpack.c.b16 %v770, %v769
    %v774 = vpack.c.b16 %v772, %v771
    %v778 = vsel %vm78, %v753, 0
    %v781 = vsel %vm78, %v754, 0
    %v784 = vsel %vm78, %v755, 0
    %v787 = vsel %vm78, %v756, 0
    %789 = vmatpush.bf16.msra.mxu0 0
    %790 = vmatpush.bf16.msra.mxu0 0
    %791 = vmatpush.bf16.msra.mxu0 0
    %792 = vmatpush.bf16.msra.mxu0 0
    %793 = vmatpush.bf16.msra.mxu0 0
    %794 = vmatpush.bf16.msra.mxu0 0
    %795 = vmatpush.bf16.msra.mxu0 %v774
    %796 = vmatpush.bf16.msra.mxu0 %v773
    %797 = vmatmul.bf16.gmra.mxu0 %v778
    %v798 = vpop.f32.mrf.mxu0
    %v799 = vadd.f32 %v763, %v798
    %v800 = vpop.f32.mrf.mxu0
    %v801 = vadd.f32 %v763, %v800
    %802 = vmatmul.bf16.gmra.mxu0 %v781
    %v803 = vpop.f32.mrf.mxu0
    %v804 = vadd.f32 %v763, %v803
    %v805 = vpop.f32.mrf.mxu0
    %v806 = vadd.f32 %v763, %v805
    %807 = vmatmul.bf16.gmra.mxu0 %v784
    %v808 = vpop.f32.mrf.mxu0
    %v809 = vadd.f32 %v763, %v808
    %v810 = vpop.f32.mrf.mxu0
    %v811 = vadd.f32 %v763, %v810
    %812 = vmatmul.bf16.gmra.mxu0 %v787
    %v813 = vpop.f32.mrf.mxu0
    %v814 = vadd.f32 %v763, %v813
    %v815 = vpop.f32.mrf.mxu0
    %v816 = vadd.f32 %v763, %v815
    %817 = vdwg.mxu0
    %v818 = vmax.f32 %v799, 0.0
    %v819 = vmax.f32 %v801, 0.0
    %v820 = vmax.f32 %v804, 0.0
    %v821 = vmax.f32 %v806, 0.0
    %v822 = vmax.f32 %v809, 0.0
    %v823 = vmax.f32 %v811, 0.0
    %v824 = vmax.f32 %v814, 0.0
    %v825 = vmax.f32 %v816, 0.0
    %v826 = vsel %vm78, %v818, 0.0
    %827 = vadd.xlane.f32.xlu0 %v826
    %v828 = vpop.xlane.xlu0 %827
    %v829 = vsel %vm78, %v819, 0.0
    %830 = vadd.xlane.f32.xlu0 %v829
    %v831 = vpop.xlane.xlu0 %830
    %v832 = vsel %vm78, %v820, 0.0
    %833 = vadd.xlane.f32.xlu0 %v832
    %v834 = vpop.xlane.xlu0 %833
    %v835 = vsel %vm78, %v821, 0.0
    %836 = vadd.xlane.f32.xlu0 %v835
    %v837 = vpop.xlane.xlu0 %836
    %v838 = vsel %vm78, %v822, 0.0
    %839 = vadd.xlane.f32.xlu0 %v838
    %v840 = vpop.xlane.xlu0 %839
    %v841 = vsel %vm78, %v823, 0.0
    %842 = vadd.xlane.f32.xlu0 %v841
    %v843 = vpop.xlane.xlu0 %842
    %v844 = vsel %vm78, %v824, 0.0
    %845 = vadd.xlane.f32.xlu0 %v844
    %v846 = vpop.xlane.xlu0 %845
    %v847 = vsel %vm78, %v825, 0.0
    %848 = vadd.xlane.f32.xlu0 %v847
    %v849 = vpop.xlane.xlu0 %848
    %v850 = vrcp.pop 32.0
    %v851 = vmul.f32 32.0, %v850
    %v852 = vsub.f32 1.0, %v851
    %v853 = vmul.f32 %v850, %v852
    %v854 = vadd.f32 %v850, %v853
    %vm855 = vweird.f32 %v850
    %v856 = vsel %vm855, %v850, %v854
    %v857 = vmul.f32 %v828, %v856
    %v858 = vmul.f32 %v831, %v856
    %v859 = vmul.f32 %v834, %v856
    %v860 = vmul.f32 %v837, %v856
    %v861 = vmul.f32 %v840, %v856
    %v862 = vmul.f32 %v843, %v856
    %v863 = vmul.f32 %v846, %v856
    %v864 = vmul.f32 %v849, %v856
    %v865 = vsub.f32 %v818, %v857
    %v866 = vsub.f32 %v819, %v858
    %v867 = vsub.f32 %v820, %v859
    %v868 = vsub.f32 %v821, %v860
    %v869 = vsub.f32 %v822, %v861
    %v870 = vsub.f32 %v823, %v862
    %v871 = vsub.f32 %v824, %v863
    %v872 = vsub.f32 %v825, %v864
    %v873 = vmul.f32 %v865, %v865
    %v874 = vmul.f32 %v866, %v866
    %v875 = vmul.f32 %v867, %v867
    %v876 = vmul.f32 %v868, %v868
    %v877 = vmul.f32 %v869, %v869
    %v878 = vmul.f32 %v870, %v870
    %v879 = vmul.f32 %v871, %v871
    %v880 = vmul.f32 %v872, %v872
    %v881 = vsel %vm78, %v873, 0.0
    %882 = vadd.xlane.f32.xlu0 %v881
    %v883 = vpop.xlane.xlu0 %882
    %v884 = vsel %vm78, %v874, 0.0
    %885 = vadd.xlane.f32.xlu0 %v884
    %v886 = vpop.xlane.xlu0 %885
    %v887 = vsel %vm78, %v875, 0.0
    %888 = vadd.xlane.f32.xlu0 %v887
    %v889 = vpop.xlane.xlu0 %888
    %v890 = vsel %vm78, %v876, 0.0
    %891 = vadd.xlane.f32.xlu0 %v890
    %v892 = vpop.xlane.xlu0 %891
    %v893 = vsel %vm78, %v877, 0.0
    %894 = vadd.xlane.f32.xlu0 %v893
    %v895 = vpop.xlane.xlu0 %894
    %v896 = vsel %vm78, %v878, 0.0
    %897 = vadd.xlane.f32.xlu0 %v896
    %v898 = vpop.xlane.xlu0 %897
    %v899 = vsel %vm78, %v879, 0.0
    %900 = vadd.xlane.f32.xlu0 %v899
    %v901 = vpop.xlane.xlu0 %900
    %v902 = vsel %vm78, %v880, 0.0
    %903 = vadd.xlane.f32.xlu0 %v902
    %v904 = vpop.xlane.xlu0 %903
    %v905 = vmul.f32 %v883, %v856
    %v906 = vmul.f32 %v886, %v856
    %v907 = vmul.f32 %v889, %v856
    %v908 = vmul.f32 %v892, %v856
    %v909 = vmul.f32 %v895, %v856
    %v910 = vmul.f32 %v898, %v856
    %v911 = vmul.f32 %v901, %v856
    %v912 = vmul.f32 %v904, %v856
    %v913 = vadd.f32 %v905, 1e-05
    %v914 = vadd.f32 %v906, 1e-05
    %v915 = vadd.f32 %v907, 1e-05
    %v916 = vadd.f32 %v908, 1e-05
    %v917 = vadd.f32 %v909, 1e-05
    %v918 = vadd.f32 %v910, 1e-05
    %v919 = vadd.f32 %v911, 1e-05
    %v920 = vadd.f32 %v912, 1e-05
    %v921 = vrsqrt.pop %v913
    %v922 = vmul.f32 %v921, %v913
    %v923 = vmul.f32 %v922, %v921
    %v924 = vmul.f32 0.5, %v923
    %v925 = vsub.f32 1.5, %v924
    %v926 = vmul.f32 %v921, %v925
    %vm927 = vweird.f32 %v913
    %vm928 = vweird.f32 %v921
    %vm929 = vmor %vm927, %vm928
    %v930 = vsel %vm929, %v921, %v926
    %v931 = vrsqrt.pop %v914
    %v932 = vmul.f32 %v931, %v914
    %v933 = vmul.f32 %v932, %v931
    %v934 = vmul.f32 0.5, %v933
    %v935 = vsub.f32 1.5, %v934
    %v936 = vmul.f32 %v931, %v935
    %vm937 = vweird.f32 %v914
    %vm938 = vweird.f32 %v931
    %vm939 = vmor %vm937, %vm938
    %v940 = vsel %vm939, %v931, %v936
    %v941 = vrsqrt.pop %v915
    %v942 = vmul.f32 %v941, %v915
    %v943 = vmul.f32 %v942, %v941
    %v944 = vmul.f32 0.5, %v943
    %v945 = vsub.f32 1.5, %v944
    %v946 = vmul.f32 %v941, %v945
    %vm947 = vweird.f32 %v915
    %vm948 = vweird.f32 %v941
    %vm949 = vmor %vm947, %vm948
    %v950 = vsel %vm949, %v941, %v946
    %v951 = vrsqrt.pop %v916
    %v952 = vmul.f32 %v951, %v916
    %v953 = vmul.f32 %v952, %v951
    %v954 = vmul.f32 0.5, %v953
    %v955 = vsub.f32 1.5, %v954
    %v956 = vmul.f32 %v951, %v955
    %vm957 = vweird.f32 %v916
    %vm958 = vweird.f32 %v951
    %vm959 = vmor %vm957, %vm958
    %v960 = vsel %vm959, %v951, %v956
    %v961 = vrsqrt.pop %v917
    %v962 = vmul.f32 %v961, %v917
    %v963 = vmul.f32 %v962, %v961
    %v964 = vmul.f32 0.5, %v963
    %v965 = vsub.f32 1.5, %v964
    %v966 = vmul.f32 %v961, %v965
    %vm967 = vweird.f32 %v917
    %vm968 = vweird.f32 %v961
    %vm969 = vmor %vm967, %vm968
    %v970 = vsel %vm969, %v961, %v966
    %v971 = vrsqrt.pop %v918
    %v972 = vmul.f32 %v971, %v918
    %v973 = vmul.f32 %v972, %v971
    %v974 = vmul.f32 0.5, %v973
    %v975 = vsub.f32 1.5, %v974
    %v976 = vmul.f32 %v971, %v975
    %vm977 = vweird.f32 %v918
    %vm978 = vweird.f32 %v971
    %vm979 = vmor %vm977, %vm978
    %v980 = vsel %vm979, %v971, %v976
    %v981 = vrsqrt.pop %v919
    %v982 = vmul.f32 %v981, %v919
    %v983 = vmul.f32 %v982, %v981
    %v984 = vmul.f32 0.5, %v983
    %v985 = vsub.f32 1.5, %v984
    %v986 = vmul.f32 %v981, %v985
    %vm987 = vweird.f32 %v919
    %vm988 = vweird.f32 %v981
    %vm989 = vmor %vm987, %vm988
    %v990 = vsel %vm989, %v981, %v986
    %v991 = vrsqrt.pop %v920
    %v992 = vmul.f32 %v991, %v920
    %v993 = vmul.f32 %v992, %v991
    %v994 = vmul.f32 0.5, %v993
    %v995 = vsub.f32 1.5, %v994
    %v996 = vmul.f32 %v991, %v995
    %vm997 = vweird.f32 %v920
    %vm998 = vweird.f32 %v991
    %vm999 = vmor %vm997, %vm998
    %v1000 = vsel %vm999, %v991, %v996
    %v1001 = vmul.f32 %v865, %v930
    %v1002 = vmul.f32 %v866, %v940
    %v1003 = vmul.f32 %v867, %v950
    %v1004 = vmul.f32 %v868, %v960
    %v1005 = vmul.f32 %v869, %v970
    %v1006 = vmul.f32 %v870, %v980
    %v1007 = vmul.f32 %v871, %v990
    %v1008 = vmul.f32 %v872, %v1000
    %v1009 = vld [vmem:[%s8] sm:$0x1]
    %v1011 = vperm.slane %v1009, 0
    %v1013 = vmul.f32 %v1001, %v1011
    %v1014 = vmul.f32 %v1002, %v1011
    %v1015 = vmul.f32 %v1003, %v1011
    %v1016 = vmul.f32 %v1004, %v1011
    %v1017 = vmul.f32 %v1005, %v1011
    %v1018 = vmul.f32 %v1006, %v1011
    %v1019 = vmul.f32 %v1007, %v1011
    %v1020 = vmul.f32 %v1008, %v1011
    %v1021 = vld [vmem:[%s9] sm:$0x1]
    %v1023 = vperm.slane %v1021, 0
    %v1025 = vadd.f32 %v1013, %v1023
    %v1026 = vadd.f32 %v1014, %v1023
    %v1027 = vadd.f32 %v1015, %v1023
    %v1028 = vadd.f32 %v1016, %v1023
    %v1029 = vadd.f32 %v1017, %v1023
    %v1030 = vadd.f32 %v1018, %v1023
    %v1031 = vadd.f32 %v1019, %v1023
    %v1032 = vadd.f32 %v1020, %v1023
    %1033 = vst.msk [vmem:[%s12] sm:$0xff] %vm78, %v1025
    %1034 = vst.msk [vmem:[%s12 + $0x8] sm:$0xff] %vm78, %v1026
    %1035 = vst.msk [vmem:[%s12 + $0x10] sm:$0xff] %vm78, %v1027
    %1036 = vst.msk [vmem:[%s12 + $0x18] sm:$0xff] %vm78, %v1028
    %1037 = vst.msk [vmem:[%s12 + $0x20] sm:$0xff] %vm78, %v1029
    %1038 = vst.msk [vmem:[%s12 + $0x28] sm:$0xff] %vm78, %v1030
    %1039 = vst.msk [vmem:[%s12 + $0x30] sm:$0xff] %vm78, %v1031
    %1040 = vst.msk [vmem:[%s12 + $0x38] sm:$0xff] %vm78, %v1032
    %1042 = vrot.lane.b32.xlu0 %v737, 96
    %v1043 = vpop.permute.xlu0 %1042
    %1045 = vst.msk [vmem:[#allocation3] sm:$0xff] %vm78, %v1043
    %v1046 = vpack.c.bf16 %v737, %v737
    %v1047 = vld [vmem:[%s10] sm:$0xf]
    %v1048 = vld [vmem:[%s10 + $0x4] sm:$0xf]
    %v1049 = vld [vmem:[%s10 + $0x8] sm:$0xf]
    %v1050 = vld [vmem:[%s10 + $0xc] sm:$0xf]
    %v1051 = vld [vmem:[%s11] sm:$0x1]
    %v1053 = vperm.slane %v1051, 0
    %1056 = vrot.lane.b32.xlu0 %v1046, 96
    %v1057 = vpop.permute.xlu0 %1056
    %v1062 = vunpack.c.l.b16 %v1047
    %v1063 = vunpack.c.l.b16 %v1048
    %v1064 = vunpack.c.l.b16 %v1049
    %v1065 = vunpack.c.l.b16 %v1050
    %v1066 = vpack.c.b16 %v1063, %v1062
    %v1067 = vpack.c.b16 %v1065, %v1064
    %v1071 = vsel %vm78, %v1057, 0
    %1073 = vmatpush.bf16.msra.mxu0 0
    %1074 = vmatpush.bf16.msra.mxu0 0
    %1075 = vmatpush.bf16.msra.mxu0 0
    %1076 = vmatpush.bf16.msra.mxu0 0
    %1077 = vmatpush.bf16.msra.mxu0 0
    %1078 = vmatpush.bf16.msra.mxu0 0
    %1079 = vmatpush.bf16.msra.mxu0 %v1067
    %1080 = vmatpush.bf16.msra.mxu0 %v1066
    %1081 = vmatmul.bf16.gmra.mxu0 %v1071
    %v1082 = vpop.f32.mrf.mxu0
    %v1083 = vadd.f32 %v1053, %v1082
    %v1084 = vpop.f32.mrf.mxu0
    %1085 = vdwg.mxu0
    %1086 = vst [vmem:[%s14] sm:$0xff] %v1083
    // Predicated region
    $region50: #{lang_module_forward.1} parent=1 // pred_check
      _
    $region51: #{lang_module_forward.1} parent=1 // pred_check_branch
      %1088 = sbr.rel (0) target = $region53
    $region52: #{lang_module_forward.1} parent=1 // pred_region
      _
    $region53: #{lang_module_forward.1} parent=1 // pred_fallthru
      _
    // Predicated region
    $region54: #{lang_module_forward.1} parent=1 // pred_check
      _
    $region55: #{lang_module_forward.1} parent=1 // pred_check_branch
      %1090 = sbr.rel (0) target = $region57
    $region56: #{lang_module_forward.1} parent=1 // pred_region
      %1092 = vsyncadd [#allocation4], 0
      %s1094 = sshll.u32 [#allocation3], 4
      %s1095 = int_to_ptr.vmem [resolvable:$true] %s1094
      %s1096 = sshll.u32 %s13, 4
      %s1097 = int_to_ptr.hbm [resolvable:$true] %s1096
      %1099 = dma.vmem_to_hbm [thread:$0]  %s1095, 128, %s1097, [#allocation4]
    $region57: #{lang_module_forward.1} parent=1 // pred_fallthru
      _
    // Predicated region
    $region58: #{lang_module_forward.1} parent=1 // pred_check
      _
    $region59: #{lang_module_forward.1} parent=1 // pred_check_branch
      %1101 = sbr.rel (0) target = $region61
    $region60: #{lang_module_forward.1} parent=1 // pred_region
      _
    $region61: #{lang_module_forward.1} parent=1 // pred_fallthru
      _
    // Predicated region
    $region62: #{lang_module_forward.1} parent=1 // pred_check
      _
    $region63: #{lang_module_forward.1} parent=1 // pred_check_branch
      %1103 = sbr.rel (0) target = $region65
    $region64: #{lang_module_forward.1} parent=1 // pred_region
      _
    $region65: #{lang_module_forward.1} parent=1 // pred_fallthru
      _
    // Predicated region
    $region66: #{lang_module_forward.1} parent=1 // pred_check
      _
    $region67: #{lang_module_forward.1} parent=1 // pred_check_branch
      %1105 = sbr.rel (0) target = $region69
    $region68: #{lang_module_forward.1} parent=1 // pred_region
      %1107 = dma.done [#allocation4], 128
    $region69: #{lang_module_forward.1} parent=1 // pred_fallthru
      _
    // Predicated region
    $region70: #{lang_module_forward.1} parent=1 // pred_check
      _
    $region71: #{lang_module_forward.1} parent=1 // pred_check_branch
      %1109 = sbr.rel (0) target = $region73
    $region72: #{lang_module_forward.1} parent=1 // pred_region
      _
    $region73: #{lang_module_forward.1} parent=1 // pred_fallthru
      _
    %1110 = vsyncpa [#allocation4], 1

</llo_original>
